<compile_context>
chip_gen: v7x
topology: tpu7x:2x2x1
jax: 0.10.0
libtpu: 0.0.40
codegen_flags: <defaults>
</compile_context>

<pallas_src>
import jax
import jax.numpy as jnp
from jax.experimental import pallas as pl
from jax.experimental.pallas import tpu as pltpu

IN_FEATURES = 686
HIDDEN = 512
OUT_FEATURES = 7

K_PAD = 768     # 6 * 128, lane-aligned K for the first matmul
OUT_PAD = 128   # lane-aligned N for the second matmul / output stores
B_ALIGN = 16    # bf16 sublane packing for the activation tile


def _round_up(n, m):
    return ((n + m - 1) // m) * m


def _lin_classifier_kernel(x_ref, w1_ref, b1_ref, w2_ref, b2_ref, out_ref):
    # x tile is already ReLU'd, bf16 and zero-padded (done for free in the
    # wrapper's pad). Linear(768 -> 512) on the MXU: bf16 operands, f32
    # accumulation, f32 bias.
    h = jnp.dot(x_ref[...], w1_ref[...],
                preferred_element_type=jnp.float32) + b1_ref[...]
    # ReLU (f32 elementwise — safe on v5e which lacks bf16 VPU).
    h = jnp.maximum(h, 0.0)
    # Dropout(0.5) == identity at inference.
    # Linear(512 -> 128[padded from 7]) on the MXU, f32 accumulation/bias.
    y = jnp.dot(h.astype(jnp.bfloat16), w2_ref[...],
                preferred_element_type=jnp.float32) + b2_ref[...]
    out_ref[...] = y.astype(out_ref.dtype)


def lin_classifier(x, w1p, b1, w2p, b2p, *, tb=1024):
    """x: (B, 686) f32; padded/bf16 params from prepare_params -> (B, 7) f32."""
    B, K = x.shape
    assert K == IN_FEATURES
    assert w1p.shape == (K_PAD, HIDDEN) and w1p.dtype == jnp.bfloat16
    assert w2p.shape == (HIDDEN, OUT_PAD) and w2p.dtype == jnp.bfloat16

    # Batch tile: multiple of 16 sublanes (bf16 packing), capped at tb and at
    # the (16-aligned) batch size.
    b_pad_a = _round_up(B, B_ALIGN)
    tb = min(tb, b_pad_a)
    # v7x megacore: ensure the grid has >=2 steps whenever the batch allows it
    # so both TensorCores get work (no effect for tiny batches).
    tb = min(tb, max(B_ALIGN, _round_up(pl.cdiv(b_pad_a, 2), B_ALIGN)))
    b_pad = _round_up(B, tb)

    # One-time pad of the activation to (b_pad, 768) with the ReLU + bf16 cast
    # fused into it; padded rows/cols are zero (relu(0) == 0 keeps them zero).
    xp = jnp.zeros((b_pad, K_PAD), jnp.bfloat16).at[:B, :IN_FEATURES].set(
        jnp.maximum(x, 0.0).astype(jnp.bfloat16))

    out = pl.pallas_call(
        _lin_classifier_kernel,
        out_shape=jax.ShapeDtypeStruct((b_pad, OUT_PAD), jnp.float32),
        grid=(b_pad // tb,),
        in_specs=[
            pl.BlockSpec((tb, K_PAD), lambda i: (i, 0)),       # x tile (pipelined, bf16)
            pl.BlockSpec((K_PAD, HIDDEN), lambda i: (0, 0)),   # w1 resident
            pl.BlockSpec((1, HIDDEN), lambda i: (0, 0)),       # b1 resident
            pl.BlockSpec((HIDDEN, OUT_PAD), lambda i: (0, 0)), # w2 resident
            pl.BlockSpec((1, OUT_PAD), lambda i: (0, 0)),      # b2 resident
        ],
        out_specs=pl.BlockSpec((tb, OUT_PAD), lambda i: (i, 0)),
        compiler_params=pltpu.CompilerParams(
            dimension_semantics=("parallel",)),
    )(xp, w1p, b1, w2p, b2p)

    return out[:B, :OUT_FEATURES]


def init_params(key):
    """Deterministic f32 parameter init matching nn.Linear shapes.

    PyTorch stores Linear weight as (out, in); we keep (in, out) so the kernel
    computes x @ W directly (same math as x @ weight.T).
    """
    k1, k2, k3, k4 = jax.random.split(key, 4)
    bound1 = 1.0 / jnp.sqrt(IN_FEATURES)
    bound2 = 1.0 / jnp.sqrt(HIDDEN)
    w1 = jax.random.uniform(k1, (IN_FEATURES, HIDDEN), jnp.float32, -bound1, bound1)
    b1 = jax.random.uniform(k2, (1, HIDDEN), jnp.float32, -bound1, bound1)
    w2 = jax.random.uniform(k3, (HIDDEN, OUT_FEATURES), jnp.float32, -bound2, bound2)
    b2 = jax.random.uniform(k4, (1, OUT_FEATURES), jnp.float32, -bound2, bound2)
    return w1, b1, w2, b2


def prepare_params(w1, b1, w2, b2):
    """One-time host prep: zero-pad K (686->768) and N (7->128), cast weights
    to bf16; biases stay f32."""
    w1p = jnp.zeros((K_PAD, HIDDEN), jnp.float32).at[:IN_FEATURES, :].set(w1)
    w1p = w1p.astype(jnp.bfloat16)
    w2p = jnp.zeros((HIDDEN, OUT_PAD), jnp.float32).at[:, :OUT_FEATURES].set(w2)
    w2p = w2p.astype(jnp.bfloat16)
    b2p = jnp.zeros((1, OUT_PAD), jnp.float32).at[:, :OUT_FEATURES].set(b2)
    return w1p, b1, w2p, b2p


def reference(x, w1p, b1, w2p, b2p):
    """Matched-precision reference (bf16 matmul operands, f32 accumulation)."""
    xb = jnp.maximum(x, 0.0).astype(jnp.bfloat16)
    xb = jnp.pad(xb, ((0, 0), (0, K_PAD - IN_FEATURES)))
    h = jnp.dot(xb, w1p, preferred_element_type=jnp.float32) + b1
    hb = jnp.maximum(h, 0.0).astype(jnp.bfloat16)
    y = jnp.dot(hb, w2p, preferred_element_type=jnp.float32) + b2p
    return y[:, :OUT_FEATURES]


if __name__ == "__main__":
    key = jax.random.PRNGKey(0)
    kx, kp = jax.random.split(key)
    B = 8
    x = jax.random.normal(kx, (B, IN_FEATURES), jnp.float32)

    w1, b1, w2, b2 = init_params(kp)
    w1p, b1, w2p, b2p = prepare_params(w1, b1, w2, b2)

    out = lin_classifier(x, w1p, b1, w2p, b2p)
    out = jax.block_until_ready(out)

    ref = reference(x, w1p, b1, w2p, b2p)
    assert out.shape == (B, OUT_FEATURES)
    assert jnp.allclose(out, ref, atol=5e-3, rtol=5e-3), (
        float(jnp.max(jnp.abs(out - ref))))
    print("KERNEL_OK")
</pallas_src>

<mosaic_0001>
module attributes {stable_mosaic.version = 11 : i64} {
  func.func @_lin_classifier_kernel(%arg0: i32, %arg1: memref<16x768xbf16, #tpu.memory_space<vmem>>, %arg2: memref<768x512xbf16, #tpu.memory_space<vmem>>, %arg3: memref<1x512xf32, #tpu.memory_space<vmem>>, %arg4: memref<512x128xbf16, #tpu.memory_space<vmem>>, %arg5: memref<1x128xf32, #tpu.memory_space<vmem>>, %arg6: memref<16x128xf32, #tpu.memory_space<vmem>>) attributes {dimension_semantics = [#tpu.dimension_semantics<parallel>], iteration_bounds = array<i64: 1>, scalar_prefetch = 0 : i64, scratch_operands = 0 : i64, tpu.core_type = #tpu.core_type<tc>, window_params = [{transform_indices = @transform_0, window_bounds = array<i64: 16, 768>}, {pipeline_mode = #tpu.pipeline_mode<synchronous>, transform_indices = @transform_1, window_bounds = array<i64: 768, 512>}, {pipeline_mode = #tpu.pipeline_mode<synchronous>, transform_indices = @transform_2, window_bounds = array<i64: 1, 512>}, {pipeline_mode = #tpu.pipeline_mode<synchronous>, transform_indices = @transform_3, window_bounds = array<i64: 512, 128>}, {pipeline_mode = #tpu.pipeline_mode<synchronous>, transform_indices = @transform_4, window_bounds = array<i64: 1, 128>}, {transform_indices = @transform_5, window_bounds = array<i64: 16, 128>}]} {
    %c0 = arith.constant 0 : index
    %c0_0 = arith.constant 0 : index
    %0 = vector.load %arg1[%c0, %c0_0] : memref<16x768xbf16, #tpu.memory_space<vmem>>, vector<16x768xbf16>
    %c0_1 = arith.constant 0 : index
    %c0_2 = arith.constant 0 : index
    %1 = vector.load %arg2[%c0_1, %c0_2] : memref<768x512xbf16, #tpu.memory_space<vmem>>, vector<768x512xbf16>
    %cst = arith.constant dense<0.000000e+00> : vector<16x512xf32>
    %2 = tpu.matmul %0, %1, %cst {dimension_numbers = #tpu.dot_dimension_numbers<[1], [0], [0], [1], [0, 0, 1, 1], [], []>} : vector<16x768xbf16>, vector<768x512xbf16>, vector<16x512xf32> -> vector<16x512xf32>
    %c0_3 = arith.constant 0 : index
    %c0_4 = arith.constant 0 : index
    %3 = vector.load %arg3[%c0_3, %c0_4] : memref<1x512xf32, #tpu.memory_space<vmem>>, vector<1x512xf32>
    %4 = vector.broadcast %3 : vector<1x512xf32> to vector<16x512xf32>
    %5 = arith.addf %2, %4 : vector<16x512xf32>
    %cst_5 = arith.constant 0.000000e+00 : f32
    %6 = vector.broadcast %cst_5 : f32 to vector<16x512xf32>
    %7 = arith.maximumf %5, %6 : vector<16x512xf32>
    %8 = arith.truncf %7 : vector<16x512xf32> to vector<16x512xbf16>
    %c0_6 = arith.constant 0 : index
    %c0_7 = arith.constant 0 : index
    %9 = vector.load %arg4[%c0_6, %c0_7] : memref<512x128xbf16, #tpu.memory_space<vmem>>, vector<512x128xbf16>
    %cst_8 = arith.constant dense<0.000000e+00> : vector<16x128xf32>
    %10 = tpu.matmul %8, %9, %cst_8 {dimension_numbers = #tpu.dot_dimension_numbers<[1], [0], [0], [1], [0, 0, 1, 1], [], []>} : vector<16x512xbf16>, vector<512x128xbf16>, vector<16x128xf32> -> vector<16x128xf32>
    %c0_9 = arith.constant 0 : index
    %c0_10 = arith.constant 0 : index
    %11 = vector.load %arg5[%c0_9, %c0_10] : memref<1x128xf32, #tpu.memory_space<vmem>>, vector<1x128xf32>
    %12 = vector.broadcast %11 : vector<1x128xf32> to vector<16x128xf32>
    %13 = arith.addf %10, %12 : vector<16x128xf32>
    %c0_11 = arith.constant 0 : index
    %c0_12 = arith.constant 0 : index
    %14 = vector.load %arg6[%c0_11, %c0_12] : memref<16x128xf32, #tpu.memory_space<vmem>>, vector<16x128xf32>
    tpu.vector_store %arg6[%c0_11, %c0_12], %13 {strides = array<i32>} : memref<16x128xf32, #tpu.memory_space<vmem>>, vector<16x128xf32>,
    return
  }
  func.func @transform_0(%arg0: i32) -> (i32, i32) {
    %c0_i32 = arith.constant 0 : i32
    %c0_i32_0 = arith.constant 0 : i32
    return %arg0, %c0_i32 : i32, i32
  }
  func.func @transform_1(%arg0: i32) -> (i32, i32) {
    %c0_i32 = arith.constant 0 : i32
    %c0_i32_0 = arith.constant 0 : i32
    %c0_i32_1 = arith.constant 0 : i32
    return %c0_i32, %c0_i32_0 : i32, i32
  }
  func.func @transform_2(%arg0: i32) -> (i32, i32) {
    %c0_i32 = arith.constant 0 : i32
    %c0_i32_0 = arith.constant 0 : i32
    %c0_i32_1 = arith.constant 0 : i32
    return %c0_i32, %c0_i32_0 : i32, i32
  }
  func.func @transform_3(%arg0: i32) -> (i32, i32) {
    %c0_i32 = arith.constant 0 : i32
    %c0_i32_0 = arith.constant 0 : i32
    %c0_i32_1 = arith.constant 0 : i32
    return %c0_i32, %c0_i32_0 : i32, i32
  }
  func.func @transform_4(%arg0: i32) -> (i32, i32) {
    %c0_i32 = arith.constant 0 : i32
    %c0_i32_0 = arith.constant 0 : i32
    %c0_i32_1 = arith.constant 0 : i32
    return %c0_i32, %c0_i32_0 : i32, i32
  }
  func.func @transform_5(%arg0: i32) -> (i32, i32) {
    %c0_i32 = arith.constant 0 : i32
    %c0_i32_0 = arith.constant 0 : i32
    return %arg0, %c0_i32 : i32, i32
  }
}

</mosaic_0001>

<llo_original>
// kernel: tpu_custom_call.1
$region0: #{tpu_custom_call.1}
  #allocation0 [shape = 'u32[]', space=smem, size = 0x4, offset = 0x4, fixed_abs, tag = 'smem constant byte address 0x4 - core index']
  #allocation1 [shape = 'u32[144,128]{1,0:T(1,128)}', space=vmem, size = 0x12000, scoped, tag = 'internal scratch']
  %s0 = inlined_call_operand.hbm [shape: bf16[16,768], index: 0, kind: input, shape index: {}]
  %s1 = inlined_call_operand.hbm [shape: bf16[768,512], index: 1, kind: input, shape index: {}]
  %s2 = inlined_call_operand.vmem [shape: f32[1,512], index: 2, kind: input, shape index: {}]
  %s3 = inlined_call_operand.hbm [shape: bf16[512,128], index: 3, kind: input, shape index: {}]
  %s4 = inlined_call_operand.vmem [shape: f32[1,128], index: 4, kind: input, shape index: {}]
  %s5 = inlined_call_operand.hbm [shape: f32[16,128], index: 5, kind: output, shape index: {}]
  %s6 = sld [smem:[#allocation0]]
  $region42: #{tpu_custom_call.1} parent=0
    _
  %s8 = ssub.s32 1, %s6
  %s9 = scalar_select 0, %s8, %s6
  $region1: #{tpu_custom_call.1} parent=0
    #allocation2 [shape = 'u8[24576]{0}', space=vmem, size = 0x6000, scoped, tag = 'input window, operand 0, single buffered']
    #allocation3 [shape = 's32[1]{0}', space=sflag, size = 0x4, scoped, tag = 'scoped memory for tpu_custom_call.1']
    #allocation4 [shape = 's32[1]{0}', space=sflag, size = 0x4, scoped, tag = 'scoped memory for tpu_custom_call.1']
    #allocation5 [shape = 'u8[786432]{0}', space=vmem, size = 0xc0000, scoped, tag = 'input window, operand 1, single buffered']
    #allocation6 [shape = 's32[1]{0}', space=sflag, size = 0x4, scoped, tag = 'scoped memory for tpu_custom_call.1']
    #allocation7 [shape = 'u8[131072]{0}', space=vmem, size = 0x20000, scoped, tag = 'input window, operand 3, single buffered']
    #allocation8 [shape = 'u8[8192]{0}', space=vmem, size = 0x2000, scoped, tag = 'output window, operand 0, single buffered']
    %10 = vsyncpa [#allocation3], 0
    %11 = vsyncpa [#allocation6], 0
    %12 = vsyncpa [#allocation4], 0
    // Predicated region
    $region2: #{tpu_custom_call.1} parent=1 // pred_check
      _
    $region3: #{tpu_custom_call.1} parent=1 // pred_check_branch
      %14 = sbr.rel (0) target = $region5
    $region4: #{tpu_custom_call.1} parent=1 // pred_region
      %s16 = ssub.s32 768, 768
      %17 = vsyncadd [#allocation3], %s16
      %s18 = sshll.u32 [#allocation2], 4
      %s19 = int_to_ptr.vmem [resolvable:$true] %s18
      %24 = dma.hbm_to_vmem [thread:$0]  %s0, 768, %s19, [#allocation3], 384, 384, 24
    $region5: #{tpu_custom_call.1} parent=1 // pred_fallthru
      _
    // Predicated region
    $region6: #{tpu_custom_call.1} parent=1 // pred_check
      _
    $region7: #{tpu_custom_call.1} parent=1 // pred_check_branch
      %26 = sbr.rel (0) target = $region9
    $region8: #{tpu_custom_call.1} parent=1 // pred_region
      %s28 = ssub.s32 24576, 24576
      %29 = vsyncadd [#allocation6], %s28
      %s30 = sshll.u32 [#allocation5], 4
      %s31 = int_to_ptr.vmem [resolvable:$true] %s30
      %36 = dma.hbm_to_vmem [thread:$0]  %s1, 24576, %s31, [#allocation6], 256, 256, 16
    $region9: #{tpu_custom_call.1} parent=1 // pred_fallthru
      _
    // Predicated region
    $region10: #{tpu_custom_call.1} parent=1 // pred_check
      _
    $region11: #{tpu_custom_call.1} parent=1 // pred_check_branch
      %38 = sbr.rel (0) target = $region13
    $region12: #{tpu_custom_call.1} parent=1 // pred_region
      _
    $region13: #{tpu_custom_call.1} parent=1 // pred_fallthru
      _
    // Predicated region
    $region14: #{tpu_custom_call.1} parent=1 // pred_check
      _
    $region15: #{tpu_custom_call.1} parent=1 // pred_check_branch
      %40 = sbr.rel (0) target = $region17
    $region16: #{tpu_custom_call.1} parent=1 // pred_region
      %s42 = ssub.s32 4096, 4096
      %43 = vsyncadd [#allocation6], %s42
      %s44 = sshll.u32 [#allocation7], 4
      %s45 = int_to_ptr.vmem [resolvable:$true] %s44
      %50 = dma.hbm_to_vmem [thread:$0]  %s3, 4096, %s45, [#allocation6], 64, 64, 4
    $region17: #{tpu_custom_call.1} parent=1 // pred_fallthru
      _
    // Predicated region
    $region18: #{tpu_custom_call.1} parent=1 // pred_check
      _
    $region19: #{tpu_custom_call.1} parent=1 // pred_check_branch
      %52 = sbr.rel (0) target = $region21
    $region20: #{tpu_custom_call.1} parent=1 // pred_region
      _
    $region21: #{tpu_custom_call.1} parent=1 // pred_fallthru
      _
    // Predicated region
    $region22: #{tpu_custom_call.1} parent=1 // pred_check
      _
    $region23: #{tpu_custom_call.1} parent=1 // pred_check_branch
      %54 = sbr.rel (0) target = $region25
    $region24: #{tpu_custom_call.1} parent=1 // pred_region
      %55 = dma.done [#allocation3], 768
    $region25: #{tpu_custom_call.1} parent=1 // pred_fallthru
      _
    // Predicated region
    $region26: #{tpu_custom_call.1} parent=1 // pred_check
      _
    $region27: #{tpu_custom_call.1} parent=1 // pred_check_branch
      %57 = sbr.rel (0) target = $region29
    $region28: #{tpu_custom_call.1} parent=1 // pred_region
      %58 = dma.done [#allocation6], 24576
    $region29: #{tpu_custom_call.1} parent=1 // pred_fallthru
      _
    // Predicated region
    $region30: #{tpu_custom_call.1} parent=1 // pred_check
      _
    $region31: #{tpu_custom_call.1} parent=1 // pred_check_branch
      %60 = sbr.rel (0) target = $region33
    $region32: #{tpu_custom_call.1} parent=1 // pred_region
      %61 = dma.done [#allocation6], 4096
    $region33: #{tpu_custom_call.1} parent=1 // pred_fallthru
      _
    %v63 = vld [vmem:[#allocation2] sm:$0xff]
    %v64 = vld [vmem:[#allocation2 + $0x8] sm:$0xff]
    %v65 = vld [vmem:[#allocation2 + $0x10] sm:$0xff]
    %v66 = vld [vmem:[#allocation2 + $0x18] sm:$0xff]
    %v67 = vld [vmem:[#allocation2 + $0x20] sm:$0xff]
    %v68 = vld [vmem:[#allocation2 + $0x28] sm:$0xff]
    %v69 = vld [vmem:[#allocation5] sm:$0xff]
    %v70 = vld [vmem:[#allocation5 + $0x8] sm:$0xff]
    %v71 = vld [vmem:[#allocation5 + $0x10] sm:$0xff]
    %v72 = vld [vmem:[#allocation5 + $0x18] sm:$0xff]
    %v73 = vld [vmem:[#allocation5 + $0x20] sm:$0xff]
    %v74 = vld [vmem:[#allocation5 + $0x28] sm:$0xff]
    %v75 = vld [vmem:[#allocation5 + $0x30] sm:$0xff]
    %v76 = vld [vmem:[#allocation5 + $0x38] sm:$0xff]
    %v77 = vld [vmem:[#allocation5 + $0x40] sm:$0xff]
    %v78 = vld [vmem:[#allocation5 + $0x48] sm:$0xff]
    %v79 = vld [vmem:[#allocation5 + $0x50] sm:$0xff]
    %v80 = vld [vmem:[#allocation5 + $0x58] sm:$0xff]
    %v81 = vld [vmem:[#allocation5 + $0x60] sm:$0xff]
    %v82 = vld [vmem:[#allocation5 + $0x68] sm:$0xff]
    %v83 = vld [vmem:[#allocation5 + $0x70] sm:$0xff]
    %v84 = vld [vmem:[#allocation5 + $0x78] sm:$0xff]
    %v85 = vld [vmem:[#allocation5 + $0x80] sm:$0xff]
    %v86 = vld [vmem:[#allocation5 + $0x88] sm:$0xff]
    %v87 = vld [vmem:[#allocation5 + $0x90] sm:$0xff]
    %v88 = vld [vmem:[#allocation5 + $0x98] sm:$0xff]
    %v89 = vld [vmem:[#allocation5 + $0xa0] sm:$0xff]
    %v90 = vld [vmem:[#allocation5 + $0xa8] sm:$0xff]
    %v91 = vld [vmem:[#allocation5 + $0xb0] sm:$0xff]
    %v92 = vld [vmem:[#allocation5 + $0xb8] sm:$0xff]
    %v93 = vld [vmem:[#allocation5 + $0xc0] sm:$0xff]
    %v94 = vld [vmem:[#allocation5 + $0xc8] sm:$0xff]
    %v95 = vld [vmem:[#allocation5 + $0xd0] sm:$0xff]
    %v96 = vld [vmem:[#allocation5 + $0xd8] sm:$0xff]
    %v97 = vld [vmem:[#allocation5 + $0xe0] sm:$0xff]
    %v98 = vld [vmem:[#allocation5 + $0xe8] sm:$0xff]
    %v99 = vld [vmem:[#allocation5 + $0xf0] sm:$0xff]
    %v100 = vld [vmem:[#allocation5 + $0xf8] sm:$0xff]
    %v101 = vld [vmem:[#allocation5 + $0x100] sm:$0xff]
    %v102 = vld [vmem:[#allocation5 + $0x108] sm:$0xff]
    %v103 = vld [vmem:[#allocation5 + $0x110] sm:$0xff]
    %v104 = vld [vmem:[#allocation5 + $0x118] sm:$0xff]
    %v105 = vld [vmem:[#allocation5 + $0x120] sm:$0xff]
    %v106 = vld [vmem:[#allocation5 + $0x128] sm:$0xff]
    %v107 = vld [vmem:[#allocation5 + $0x130] sm:$0xff]
    %v108 = vld [vmem:[#allocation5 + $0x138] sm:$0xff]
    %v109 = vld [vmem:[#allocation5 + $0x140] sm:$0xff]
    %v110 = vld [vmem:[#allocation5 + $0x148] sm:$0xff]
    %v111 = vld [vmem:[#allocation5 + $0x150] sm:$0xff]
    %v112 = vld [vmem:[#allocation5 + $0x158] sm:$0xff]
    %v113 = vld [vmem:[#allocation5 + $0x160] sm:$0xff]
    %v114 = vld [vmem:[#allocation5 + $0x168] sm:$0xff]
    %v115 = vld [vmem:[#allocation5 + $0x170] sm:$0xff]
    %v116 = vld [vmem:[#allocation5 + $0x178] sm:$0xff]
    %v117 = vld [vmem:[#allocation5 + $0x180] sm:$0xff]
    %v118 = vld [vmem:[#allocation5 + $0x188] sm:$0xff]
    %v119 = vld [vmem:[#allocation5 + $0x190] sm:$0xff]
    %v120 = vld [vmem:[#allocation5 + $0x198] sm:$0xff]
    %v121 = vld [vmem:[#allocation5 + $0x1a0] sm:$0xff]
    %v122 = vld [vmem:[#allocation5 + $0x1a8] sm:$0xff]
    %v123 = vld [vmem:[#allocation5 + $0x1b0] sm:$0xff]
    %v124 = vld [vmem:[#allocation5 + $0x1b8] sm:$0xff]
    %v125 = vld [vmem:[#allocation5 + $0x1c0] sm:$0xff]
    %v126 = vld [vmem:[#allocation5 + $0x1c8] sm:$0xff]
    %v127 = vld [vmem:[#allocation5 + $0x1d0] sm:$0xff]
    %v128 = vld [vmem:[#allocation5 + $0x1d8] sm:$0xff]
    %v129 = vld [vmem:[#allocation5 + $0x1e0] sm:$0xff]
    %v130 = vld [vmem:[#allocation5 + $0x1e8] sm:$0xff]
    %v131 = vld [vmem:[#allocation5 + $0x1f0] sm:$0xff]
    %v132 = vld [vmem:[#allocation5 + $0x1f8] sm:$0xff]
    %v133 = vld [vmem:[#allocation5 + $0x200] sm:$0xff]
    %v134 = vld [vmem:[#allocation5 + $0x208] sm:$0xff]
    %v135 = vld [vmem:[#allocation5 + $0x210] sm:$0xff]
    %v136 = vld [vmem:[#allocation5 + $0x218] sm:$0xff]
    %v137 = vld [vmem:[#allocation5 + $0x220] sm:$0xff]
    %v138 = vld [vmem:[#allocation5 + $0x228] sm:$0xff]
    %v139 = vld [vmem:[#allocation5 + $0x230] sm:$0xff]
    %v140 = vld [vmem:[#allocation5 + $0x238] sm:$0xff]
    %v141 = vld [vmem:[#allocation5 + $0x240] sm:$0xff]
    %v142 = vld [vmem:[#allocation5 + $0x248] sm:$0xff]
    %v143 = vld [vmem:[#allocation5 + $0x250] sm:$0xff]
    %v144 = vld [vmem:[#allocation5 + $0x258] sm:$0xff]
    %v145 = vld [vmem:[#allocation5 + $0x260] sm:$0xff]
    %v146 = vld [vmem:[#allocation5 + $0x268] sm:$0xff]
    %v147 = vld [vmem:[#allocation5 + $0x270] sm:$0xff]
    %v148 = vld [vmem:[#allocation5 + $0x278] sm:$0xff]
    %v149 = vld [vmem:[#allocation5 + $0x280] sm:$0xff]
    %v150 = vld [vmem:[#allocation5 + $0x288] sm:$0xff]
    %v151 = vld [vmem:[#allocation5 + $0x290] sm:$0xff]
    %v152 = vld [vmem:[#allocation5 + $0x298] sm:$0xff]
    %v153 = vld [vmem:[#allocation5 + $0x2a0] sm:$0xff]
    %v154 = vld [vmem:[#allocation5 + $0x2a8] sm:$0xff]
    %v155 = vld [vmem:[#allocation5 + $0x2b0] sm:$0xff]
    %v156 = vld [vmem:[#allocation5 + $0x2b8] sm:$0xff]
    %v157 = vld [vmem:[#allocation5 + $0x2c0] sm:$0xff]
    %v158 = vld [vmem:[#allocation5 + $0x2c8] sm:$0xff]
    %v159 = vld [vmem:[#allocation5 + $0x2d0] sm:$0xff]
    %v160 = vld [vmem:[#allocation5 + $0x2d8] sm:$0xff]
    %v161 = vld [vmem:[#allocation5 + $0x2e0] sm:$0xff]
    %v162 = vld [vmem:[#allocation5 + $0x2e8] sm:$0xff]
    %v163 = vld [vmem:[#allocation5 + $0x2f0] sm:$0xff]
    %v164 = vld [vmem:[#allocation5 + $0x2f8] sm:$0xff]
    %v165 = vld [vmem:[#allocation5 + $0x300] sm:$0xff]
    %v166 = vld [vmem:[#allocation5 + $0x308] sm:$0xff]
    %v167 = vld [vmem:[#allocation5 + $0x310] sm:$0xff]
    %v168 = vld [vmem:[#allocation5 + $0x318] sm:$0xff]
    %v169 = vld [vmem:[#allocation5 + $0x320] sm:$0xff]
    %v170 = vld [vmem:[#allocation5 + $0x328] sm:$0xff]
    %v171 = vld [vmem:[#allocation5 + $0x330] sm:$0xff]
    %v172 = vld [vmem:[#allocation5 + $0x338] sm:$0xff]
    %v173 = vld [vmem:[#allocation5 + $0x340] sm:$0xff]
    %v174 = vld [vmem:[#allocation5 + $0x348] sm:$0xff]
    %v175 = vld [vmem:[#allocation5 + $0x350] sm:$0xff]
    %v176 = vld [vmem:[#allocation5 + $0x358] sm:$0xff]
    %v177 = vld [vmem:[#allocation5 + $0x360] sm:$0xff]
    %v178 = vld [vmem:[#allocation5 + $0x368] sm:$0xff]
    %v179 = vld [vmem:[#allocation5 + $0x370] sm:$0xff]
    %v180 = vld [vmem:[#allocation5 + $0x378] sm:$0xff]
    %v181 = vld [vmem:[#allocation5 + $0x380] sm:$0xff]
    %v182 = vld [vmem:[#allocation5 + $0x388] sm:$0xff]
    %v183 = vld [vmem:[#allocation5 + $0x390] sm:$0xff]
    %v184 = vld [vmem:[#allocation5 + $0x398] sm:$0xff]
    %v185 = vld [vmem:[#allocation5 + $0x3a0] sm:$0xff]
    %v186 = vld [vmem:[#allocation5 + $0x3a8] sm:$0xff]
    %v187 = vld [vmem:[#allocation5 + $0x3b0] sm:$0xff]
    %v188 = vld [vmem:[#allocation5 + $0x3b8] sm:$0xff]
    %v189 = vld [vmem:[#allocation5 + $0x3c0] sm:$0xff]
    %v190 = vld [vmem:[#allocation5 + $0x3c8] sm:$0xff]
    %v191 = vld [vmem:[#allocation5 + $0x3d0] sm:$0xff]
    %v192 = vld [vmem:[#allocation5 + $0x3d8] sm:$0xff]
    %v193 = vld [vmem:[#allocation5 + $0x3e0] sm:$0xff]
    %v194 = vld [vmem:[#allocation5 + $0x3e8] sm:$0xff]
    %v195 = vld [vmem:[#allocation5 + $0x3f0] sm:$0xff]
    %v196 = vld [vmem:[#allocation5 + $0x3f8] sm:$0xff]
    %v197 = vld [vmem:[#allocation5 + $0x400] sm:$0xff]
    %v198 = vld [vmem:[#allocation5 + $0x408] sm:$0xff]
    %v199 = vld [vmem:[#allocation5 + $0x410] sm:$0xff]
    %v200 = vld [vmem:[#allocation5 + $0x418] sm:$0xff]
    %v201 = vld [vmem:[#allocation5 + $0x420] sm:$0xff]
    %v202 = vld [vmem:[#allocation5 + $0x428] sm:$0xff]
    %v203 = vld [vmem:[#allocation5 + $0x430] sm:$0xff]
    %v204 = vld [vmem:[#allocation5 + $0x438] sm:$0xff]
    %v205 = vld [vmem:[#allocation5 + $0x440] sm:$0xff]
    %v206 = vld [vmem:[#allocation5 + $0x448] sm:$0xff]
    %v207 = vld [vmem:[#allocation5 + $0x450] sm:$0xff]
    %v208 = vld [vmem:[#allocation5 + $0x458] sm:$0xff]
    %v209 = vld [vmem:[#allocation5 + $0x460] sm:$0xff]
    %v210 = vld [vmem:[#allocation5 + $0x468] sm:$0xff]
    %v211 = vld [vmem:[#allocation5 + $0x470] sm:$0xff]
    %v212 = vld [vmem:[#allocation5 + $0x478] sm:$0xff]
    %v213 = vld [vmem:[#allocation5 + $0x480] sm:$0xff]
    %v214 = vld [vmem:[#allocation5 + $0x488] sm:$0xff]
    %v215 = vld [vmem:[#allocation5 + $0x490] sm:$0xff]
    %v216 = vld [vmem:[#allocation5 + $0x498] sm:$0xff]
    %v217 = vld [vmem:[#allocation5 + $0x4a0] sm:$0xff]
    %v218 = vld [vmem:[#allocation5 + $0x4a8] sm:$0xff]
    %v219 = vld [vmem:[#allocation5 + $0x4b0] sm:$0xff]
    %v220 = vld [vmem:[#allocation5 + $0x4b8] sm:$0xff]
    %v221 = vld [vmem:[#allocation5 + $0x4c0] sm:$0xff]
    %v222 = vld [vmem:[#allocation5 + $0x4c8] sm:$0xff]
    %v223 = vld [vmem:[#allocation5 + $0x4d0] sm:$0xff]
    %v224 = vld [vmem:[#allocation5 + $0x4d8] sm:$0xff]
    %v225 = vld [vmem:[#allocation5 + $0x4e0] sm:$0xff]
    %v226 = vld [vmem:[#allocation5 + $0x4e8] sm:$0xff]
    %v227 = vld [vmem:[#allocation5 + $0x4f0] sm:$0xff]
    %v228 = vld [vmem:[#allocation5 + $0x4f8] sm:$0xff]
    %v229 = vld [vmem:[#allocation5 + $0x500] sm:$0xff]
    %v230 = vld [vmem:[#allocation5 + $0x508] sm:$0xff]
    %v231 = vld [vmem:[#allocation5 + $0x510] sm:$0xff]
    %v232 = vld [vmem:[#allocation5 + $0x518] sm:$0xff]
    %v233 = vld [vmem:[#allocation5 + $0x520] sm:$0xff]
    %v234 = vld [vmem:[#allocation5 + $0x528] sm:$0xff]
    %v235 = vld [vmem:[#allocation5 + $0x530] sm:$0xff]
    %v236 = vld [vmem:[#allocation5 + $0x538] sm:$0xff]
    %v237 = vld [vmem:[#allocation5 + $0x540] sm:$0xff]
    %v238 = vld [vmem:[#allocation5 + $0x548] sm:$0xff]
    %v239 = vld [vmem:[#allocation5 + $0x550] sm:$0xff]
    %v240 = vld [vmem:[#allocation5 + $0x558] sm:$0xff]
    %v241 = vld [vmem:[#allocation5 + $0x560] sm:$0xff]
    %v242 = vld [vmem:[#allocation5 + $0x568] sm:$0xff]
    %v243 = vld [vmem:[#allocation5 + $0x570] sm:$0xff]
    %v244 = vld [vmem:[#allocation5 + $0x578] sm:$0xff]
    %v245 = vld [vmem:[#allocation5 + $0x580] sm:$0xff]
    %v246 = vld [vmem:[#allocation5 + $0x588] sm:$0xff]
    %v247 = vld [vmem:[#allocation5 + $0x590] sm:$0xff]
    %v248 = vld [vmem:[#allocation5 + $0x598] sm:$0xff]
    %v249 = vld [vmem:[#allocation5 + $0x5a0] sm:$0xff]
    %v250 = vld [vmem:[#allocation5 + $0x5a8] sm:$0xff]
    %v251 = vld [vmem:[#allocation5 + $0x5b0] sm:$0xff]
    %v252 = vld [vmem:[#allocation5 + $0x5b8] sm:$0xff]
    %v253 = vld [vmem:[#allocation5 + $0x5c0] sm:$0xff]
    %v254 = vld [vmem:[#allocation5 + $0x5c8] sm:$0xff]
    %v255 = vld [vmem:[#allocation5 + $0x5d0] sm:$0xff]
    %v256 = vld [vmem:[#allocation5 + $0x5d8] sm:$0xff]
    %v257 = vld [vmem:[#allocation5 + $0x5e0] sm:$0xff]
    %v258 = vld [vmem:[#allocation5 + $0x5e8] sm:$0xff]
    %v259 = vld [vmem:[#allocation5 + $0x5f0] sm:$0xff]
    %v260 = vld [vmem:[#allocation5 + $0x5f8] sm:$0xff]
    %v261 = vld [vmem:[%s2] sm:$0xf]
    %v263 = vlaneseq
    %v264 = vshrl.u32 %v263, 7
    %v265 = vsub.s32 0, %v264
    %v266 = vrot.slane %v261, %v265
    %v267 = vlaneseq
    %v268 = vshrl.u32 %v267, 7
    %v269 = vsub.s32 1, %v268
    %v270 = vrot.slane %v261, %v269
    %v271 = vlaneseq
    %v272 = vshrl.u32 %v271, 7
    %v273 = vsub.s32 2, %v272
    %v274 = vrot.slane %v261, %v273
    %v275 = vlaneseq
    %v276 = vshrl.u32 %v275, 7
    %v277 = vsub.s32 3, %v276
    %v278 = vrot.slane %v261, %v277
    %v289 = vunpack.c.l.b16 %v63
    %v290 = vunpack.c.h.b16 %v63
    %v291 = vunpack.c.l.b16 %v64
    %v292 = vunpack.c.h.b16 %v64
    %v293 = vunpack.c.l.b16 %v65
    %v294 = vunpack.c.h.b16 %v65
    %v295 = vunpack.c.l.b16 %v66
    %v296 = vunpack.c.h.b16 %v66
    %v297 = vunpack.c.l.b16 %v67
    %v298 = vunpack.c.h.b16 %v67
    %v299 = vunpack.c.l.b16 %v68
    %v300 = vunpack.c.h.b16 %v68
    %v301 = vpack.c.b16 %v295, %v289
    %v302 = vpack.c.b16 %v296, %v290
    %v303 = vpack.c.b16 %v297, %v291
    %v304 = vpack.c.b16 %v298, %v292
    %v305 = vpack.c.b16 %v299, %v293
    %v306 = vpack.c.b16 %v300, %v294
    %v505 = vunpack.c.l.b16 %v69
    %v506 = vunpack.c.h.b16 %v69
    %v507 = vunpack.c.l.b16 %v70
    %v508 = vunpack.c.h.b16 %v70
    %v509 = vunpack.c.l.b16 %v71
    %v510 = vunpack.c.h.b16 %v71
    %v511 = vunpack.c.l.b16 %v72
    %v512 = vunpack.c.h.b16 %v72
    %v513 = vunpack.c.l.b16 %v73
    %v514 = vunpack.c.h.b16 %v73
    %v515 = vunpack.c.l.b16 %v74
    %v516 = vunpack.c.h.b16 %v74
    %v517 = vunpack.c.l.b16 %v75
    %v518 = vunpack.c.h.b16 %v75
    %v519 = vunpack.c.l.b16 %v76
    %v520 = vunpack.c.h.b16 %v76
    %v521 = vunpack.c.l.b16 %v77
    %v522 = vunpack.c.h.b16 %v77
    %v523 = vunpack.c.l.b16 %v78
    %v524 = vunpack.c.h.b16 %v78
    %v525 = vunpack.c.l.b16 %v79
    %v526 = vunpack.c.h.b16 %v79
    %v527 = vunpack.c.l.b16 %v80
    %v528 = vunpack.c.h.b16 %v80
    %v529 = vunpack.c.l.b16 %v81
    %v530 = vunpack.c.h.b16 %v81
    %v531 = vunpack.c.l.b16 %v82
    %v532 = vunpack.c.h.b16 %v82
    %v533 = vunpack.c.l.b16 %v83
    %v534 = vunpack.c.h.b16 %v83
    %v535 = vunpack.c.l.b16 %v84
    %v536 = vunpack.c.h.b16 %v84
    %v537 = vunpack.c.l.b16 %v85
    %v538 = vunpack.c.h.b16 %v85
    %v539 = vunpack.c.l.b16 %v86
    %v540 = vunpack.c.h.b16 %v86
    %v541 = vunpack.c.l.b16 %v87
    %v542 = vunpack.c.h.b16 %v87
    %v543 = vunpack.c.l.b16 %v88
    %v544 = vunpack.c.h.b16 %v88
    %v545 = vunpack.c.l.b16 %v89
    %v546 = vunpack.c.h.b16 %v89
    %v547 = vunpack.c.l.b16 %v90
    %v548 = vunpack.c.h.b16 %v90
    %v549 = vunpack.c.l.b16 %v91
    %v550 = vunpack.c.h.b16 %v91
    %v551 = vunpack.c.l.b16 %v92
    %v552 = vunpack.c.h.b16 %v92
    %v553 = vunpack.c.l.b16 %v93
    %v554 = vunpack.c.h.b16 %v93
    %v555 = vunpack.c.l.b16 %v94
    %v556 = vunpack.c.h.b16 %v94
    %v557 = vunpack.c.l.b16 %v95
    %v558 = vunpack.c.h.b16 %v95
    %v559 = vunpack.c.l.b16 %v96
    %v560 = vunpack.c.h.b16 %v96
    %v561 = vunpack.c.l.b16 %v97
    %v562 = vunpack.c.h.b16 %v97
    %v563 = vunpack.c.l.b16 %v98
    %v564 = vunpack.c.h.b16 %v98
    %v565 = vunpack.c.l.b16 %v99
    %v566 = vunpack.c.h.b16 %v99
    %v567 = vunpack.c.l.b16 %v100
    %v568 = vunpack.c.h.b16 %v100
    %v569 = vunpack.c.l.b16 %v101
    %v570 = vunpack.c.h.b16 %v101
    %v571 = vunpack.c.l.b16 %v102
    %v572 = vunpack.c.h.b16 %v102
    %v573 = vunpack.c.l.b16 %v103
    %v574 = vunpack.c.h.b16 %v103
    %v575 = vunpack.c.l.b16 %v104
    %v576 = vunpack.c.h.b16 %v104
    %v577 = vunpack.c.l.b16 %v105
    %v578 = vunpack.c.h.b16 %v105
    %v579 = vunpack.c.l.b16 %v106
    %v580 = vunpack.c.h.b16 %v106
    %v581 = vunpack.c.l.b16 %v107
    %v582 = vunpack.c.h.b16 %v107
    %v583 = vunpack.c.l.b16 %v108
    %v584 = vunpack.c.h.b16 %v108
    %v585 = vunpack.c.l.b16 %v109
    %v586 = vunpack.c.h.b16 %v109
    %v587 = vunpack.c.l.b16 %v110
    %v588 = vunpack.c.h.b16 %v110
    %v589 = vunpack.c.l.b16 %v111
    %v590 = vunpack.c.h.b16 %v111
    %v591 = vunpack.c.l.b16 %v112
    %v592 = vunpack.c.h.b16 %v112
    %v593 = vunpack.c.l.b16 %v113
    %v594 = vunpack.c.h.b16 %v113
    %v595 = vunpack.c.l.b16 %v114
    %v596 = vunpack.c.h.b16 %v114
    %v597 = vunpack.c.l.b16 %v115
    %v598 = vunpack.c.h.b16 %v115
    %v599 = vunpack.c.l.b16 %v116
    %v600 = vunpack.c.h.b16 %v116
    %v601 = vunpack.c.l.b16 %v117
    %v602 = vunpack.c.h.b16 %v117
    %v603 = vunpack.c.l.b16 %v118
    %v604 = vunpack.c.h.b16 %v118
    %v605 = vunpack.c.l.b16 %v119
    %v606 = vunpack.c.h.b16 %v119
    %v607 = vunpack.c.l.b16 %v120
    %v608 = vunpack.c.h.b16 %v120
    %v609 = vunpack.c.l.b16 %v121
    %v610 = vunpack.c.h.b16 %v121
    %v611 = vunpack.c.l.b16 %v122
    %v612 = vunpack.c.h.b16 %v122
    %v613 = vunpack.c.l.b16 %v123
    %v614 = vunpack.c.h.b16 %v123
    %v615 = vunpack.c.l.b16 %v124
    %v616 = vunpack.c.h.b16 %v124
    %v617 = vunpack.c.l.b16 %v125
    %v618 = vunpack.c.h.b16 %v125
    %v619 = vunpack.c.l.b16 %v126
    %v620 = vunpack.c.h.b16 %v126
    %v621 = vunpack.c.l.b16 %v127
    %v622 = vunpack.c.h.b16 %v127
    %v623 = vunpack.c.l.b16 %v128
    %v624 = vunpack.c.h.b16 %v128
    %v625 = vunpack.c.l.b16 %v129
    %v626 = vunpack.c.h.b16 %v129
    %v627 = vunpack.c.l.b16 %v130
    %v628 = vunpack.c.h.b16 %v130
    %v629 = vunpack.c.l.b16 %v131
    %v630 = vunpack.c.h.b16 %v131
    %v631 = vunpack.c.l.b16 %v132
    %v632 = vunpack.c.h.b16 %v132
    %v633 = vunpack.c.l.b16 %v133
    %v634 = vunpack.c.h.b16 %v133
    %v635 = vunpack.c.l.b16 %v134
    %v636 = vunpack.c.h.b16 %v134
    %v637 = vunpack.c.l.b16 %v135
    %v638 = vunpack.c.h.b16 %v135
    %v639 = vunpack.c.l.b16 %v136
    %v640 = vunpack.c.h.b16 %v136
    %v641 = vunpack.c.l.b16 %v137
    %v642 = vunpack.c.h.b16 %v137
    %v643 = vunpack.c.l.b16 %v138
    %v644 = vunpack.c.h.b16 %v138
    %v645 = vunpack.c.l.b16 %v139
    %v646 = vunpack.c.h.b16 %v139
    %v647 = vunpack.c.l.b16 %v140
    %v648 = vunpack.c.h.b16 %v140
    %v649 = vunpack.c.l.b16 %v141
    %v650 = vunpack.c.h.b16 %v141
    %v651 = vunpack.c.l.b16 %v142
    %v652 = vunpack.c.h.b16 %v142
    %v653 = vunpack.c.l.b16 %v143
    %v654 = vunpack.c.h.b16 %v143
    %v655 = vunpack.c.l.b16 %v144
    %v656 = vunpack.c.h.b16 %v144
    %v657 = vunpack.c.l.b16 %v145
    %v658 = vunpack.c.h.b16 %v145
    %v659 = vunpack.c.l.b16 %v146
    %v660 = vunpack.c.h.b16 %v146
    %v661 = vunpack.c.l.b16 %v147
    %v662 = vunpack.c.h.b16 %v147
    %v663 = vunpack.c.l.b16 %v148
    %v664 = vunpack.c.h.b16 %v148
    %v665 = vunpack.c.l.b16 %v149
    %v666 = vunpack.c.h.b16 %v149
    %v667 = vunpack.c.l.b16 %v150
    %v668 = vunpack.c.h.b16 %v150
    %v669 = vunpack.c.l.b16 %v151
    %v670 = vunpack.c.h.b16 %v151
    %v671 = vunpack.c.l.b16 %v152
    %v672 = vunpack.c.h.b16 %v152
    %v673 = vunpack.c.l.b16 %v153
    %v674 = vunpack.c.h.b16 %v153
    %v675 = vunpack.c.l.b16 %v154
    %v676 = vunpack.c.h.b16 %v154
    %v677 = vunpack.c.l.b16 %v155
    %v678 = vunpack.c.h.b16 %v155
    %v679 = vunpack.c.l.b16 %v156
    %v680 = vunpack.c.h.b16 %v156
    %v681 = vunpack.c.l.b16 %v157
    %v682 = vunpack.c.h.b16 %v157
    %v683 = vunpack.c.l.b16 %v158
    %v684 = vunpack.c.h.b16 %v158
    %v685 = vunpack.c.l.b16 %v159
    %v686 = vunpack.c.h.b16 %v159
    %v687 = vunpack.c.l.b16 %v160
    %v688 = vunpack.c.h.b16 %v160
    %v689 = vunpack.c.l.b16 %v161
    %v690 = vunpack.c.h.b16 %v161
    %v691 = vunpack.c.l.b16 %v162
    %v692 = vunpack.c.h.b16 %v162
    %v693 = vunpack.c.l.b16 %v163
    %v694 = vunpack.c.h.b16 %v163
    %v695 = vunpack.c.l.b16 %v164
    %v696 = vunpack.c.h.b16 %v164
    %v697 = vunpack.c.l.b16 %v165
    %v698 = vunpack.c.h.b16 %v165
    %v699 = vunpack.c.l.b16 %v166
    %v700 = vunpack.c.h.b16 %v166
    %v701 = vunpack.c.l.b16 %v167
    %v702 = vunpack.c.h.b16 %v167
    %v703 = vunpack.c.l.b16 %v168
    %v704 = vunpack.c.h.b16 %v168
    %v705 = vunpack.c.l.b16 %v169
    %v706 = vunpack.c.h.b16 %v169
    %v707 = vunpack.c.l.b16 %v170
    %v708 = vunpack.c.h.b16 %v170
    %v709 = vunpack.c.l.b16 %v171
    %v710 = vunpack.c.h.b16 %v171
    %v711 = vunpack.c.l.b16 %v172
    %v712 = vunpack.c.h.b16 %v172
    %v713 = vunpack.c.l.b16 %v173
    %v714 = vunpack.c.h.b16 %v173
    %v715 = vunpack.c.l.b16 %v174
    %v716 = vunpack.c.h.b16 %v174
    %v717 = vunpack.c.l.b16 %v175
    %v718 = vunpack.c.h.b16 %v175
    %v719 = vunpack.c.l.b16 %v176
    %v720 = vunpack.c.h.b16 %v176
    %v721 = vunpack.c.l.b16 %v177
    %v722 = vunpack.c.h.b16 %v177
    %v723 = vunpack.c.l.b16 %v178
    %v724 = vunpack.c.h.b16 %v178
    %v725 = vunpack.c.l.b16 %v179
    %v726 = vunpack.c.h.b16 %v179
    %v727 = vunpack.c.l.b16 %v180
    %v728 = vunpack.c.h.b16 %v180
    %v729 = vunpack.c.l.b16 %v181
    %v730 = vunpack.c.h.b16 %v181
    %v731 = vunpack.c.l.b16 %v182
    %v732 = vunpack.c.h.b16 %v182
    %v733 = vunpack.c.l.b16 %v183
    %v734 = vunpack.c.h.b16 %v183
    %v735 = vunpack.c.l.b16 %v184
    %v736 = vunpack.c.h.b16 %v184
    %v737 = vunpack.c.l.b16 %v185
    %v738 = vunpack.c.h.b16 %v185
    %v739 = vunpack.c.l.b16 %v186
    %v740 = vunpack.c.h.b16 %v186
    %v741 = vunpack.c.l.b16 %v187
    %v742 = vunpack.c.h.b16 %v187
    %v743 = vunpack.c.l.b16 %v188
    %v744 = vunpack.c.h.b16 %v188
    %v745 = vunpack.c.l.b16 %v189
    %v746 = vunpack.c.h.b16 %v189
    %v747 = vunpack.c.l.b16 %v190
    %v748 = vunpack.c.h.b16 %v190
    %v749 = vunpack.c.l.b16 %v191
    %v750 = vunpack.c.h.b16 %v191
    %v751 = vunpack.c.l.b16 %v192
    %v752 = vunpack.c.h.b16 %v192
    %v753 = vunpack.c.l.b16 %v193
    %v754 = vunpack.c.h.b16 %v193
    %v755 = vunpack.c.l.b16 %v194
    %v756 = vunpack.c.h.b16 %v194
    %v757 = vunpack.c.l.b16 %v195
    %v758 = vunpack.c.h.b16 %v195
    %v759 = vunpack.c.l.b16 %v196
    %v760 = vunpack.c.h.b16 %v196
    %v761 = vunpack.c.l.b16 %v197
    %v762 = vunpack.c.h.b16 %v197
    %v763 = vunpack.c.l.b16 %v198
    %v764 = vunpack.c.h.b16 %v198
    %v765 = vunpack.c.l.b16 %v199
    %v766 = vunpack.c.h.b16 %v199
    %v767 = vunpack.c.l.b16 %v200
    %v768 = vunpack.c.h.b16 %v200
    %v769 = vunpack.c.l.b16 %v201
    %v770 = vunpack.c.h.b16 %v201
    %v771 = vunpack.c.l.b16 %v202
    %v772 = vunpack.c.h.b16 %v202
    %v773 = vunpack.c.l.b16 %v203
    %v774 = vunpack.c.h.b16 %v203
    %v775 = vunpack.c.l.b16 %v204
    %v776 = vunpack.c.h.b16 %v204
    %v777 = vunpack.c.l.b16 %v205
    %v778 = vunpack.c.h.b16 %v205
    %v779 = vunpack.c.l.b16 %v206
    %v780 = vunpack.c.h.b16 %v206
    %v781 = vunpack.c.l.b16 %v207
    %v782 = vunpack.c.h.b16 %v207
    %v783 = vunpack.c.l.b16 %v208
    %v784 = vunpack.c.h.b16 %v208
    %v785 = vunpack.c.l.b16 %v209
    %v786 = vunpack.c.h.b16 %v209
    %v787 = vunpack.c.l.b16 %v210
    %v788 = vunpack.c.h.b16 %v210
    %v789 = vunpack.c.l.b16 %v211
    %v790 = vunpack.c.h.b16 %v211
    %v791 = vunpack.c.l.b16 %v212
    %v792 = vunpack.c.h.b16 %v212
    %v793 = vunpack.c.l.b16 %v213
    %v794 = vunpack.c.h.b16 %v213
    %v795 = vunpack.c.l.b16 %v214
    %v796 = vunpack.c.h.b16 %v214
    %v797 = vunpack.c.l.b16 %v215
    %v798 = vunpack.c.h.b16 %v215
    %v799 = vunpack.c.l.b16 %v216
    %v800 = vunpack.c.h.b16 %v216
    %v801 = vunpack.c.l.b16 %v217
    %v802 = vunpack.c.h.b16 %v217
    %v803 = vunpack.c.l.b16 %v218
    %v804 = vunpack.c.h.b16 %v218
    %v805 = vunpack.c.l.b16 %v219
    %v806 = vunpack.c.h.b16 %v219
    %v807 = vunpack.c.l.b16 %v220
    %v808 = vunpack.c.h.b16 %v220
    %v809 = vunpack.c.l.b16 %v221
    %v810 = vunpack.c.h.b16 %v221
    %v811 = vunpack.c.l.b16 %v222
    %v812 = vunpack.c.h.b16 %v222
    %v813 = vunpack.c.l.b16 %v223
    %v814 = vunpack.c.h.b16 %v223
    %v815 = vunpack.c.l.b16 %v224
    %v816 = vunpack.c.h.b16 %v224
    %v817 = vunpack.c.l.b16 %v225
    %v818 = vunpack.c.h.b16 %v225
    %v819 = vunpack.c.l.b16 %v226
    %v820 = vunpack.c.h.b16 %v226
    %v821 = vunpack.c.l.b16 %v227
    %v822 = vunpack.c.h.b16 %v227
    %v823 = vunpack.c.l.b16 %v228
    %v824 = vunpack.c.h.b16 %v228
    %v825 = vunpack.c.l.b16 %v229
    %v826 = vunpack.c.h.b16 %v229
    %v827 = vunpack.c.l.b16 %v230
    %v828 = vunpack.c.h.b16 %v230
    %v829 = vunpack.c.l.b16 %v231
    %v830 = vunpack.c.h.b16 %v231
    %v831 = vunpack.c.l.b16 %v232
    %v832 = vunpack.c.h.b16 %v232
    %v833 = vunpack.c.l.b16 %v233
    %v834 = vunpack.c.h.b16 %v233
    %v835 = vunpack.c.l.b16 %v234
    %v836 = vunpack.c.h.b16 %v234
    %v837 = vunpack.c.l.b16 %v235
    %v838 = vunpack.c.h.b16 %v235
    %v839 = vunpack.c.l.b16 %v236
    %v840 = vunpack.c.h.b16 %v236
    %v841 = vunpack.c.l.b16 %v237
    %v842 = vunpack.c.h.b16 %v237
    %v843 = vunpack.c.l.b16 %v238
    %v844 = vunpack.c.h.b16 %v238
    %v845 = vunpack.c.l.b16 %v239
    %v846 = vunpack.c.h.b16 %v239
    %v847 = vunpack.c.l.b16 %v240
    %v848 = vunpack.c.h.b16 %v240
    %v849 = vunpack.c.l.b16 %v241
    %v850 = vunpack.c.h.b16 %v241
    %v851 = vunpack.c.l.b16 %v242
    %v852 = vunpack.c.h.b16 %v242
    %v853 = vunpack.c.l.b16 %v243
    %v854 = vunpack.c.h.b16 %v243
    %v855 = vunpack.c.l.b16 %v244
    %v856 = vunpack.c.h.b16 %v244
    %v857 = vunpack.c.l.b16 %v245
    %v858 = vunpack.c.h.b16 %v245
    %v859 = vunpack.c.l.b16 %v246
    %v860 = vunpack.c.h.b16 %v246
    %v861 = vunpack.c.l.b16 %v247
    %v862 = vunpack.c.h.b16 %v247
    %v863 = vunpack.c.l.b16 %v248
    %v864 = vunpack.c.h.b16 %v248
    %v865 = vunpack.c.l.b16 %v249
    %v866 = vunpack.c.h.b16 %v249
    %v867 = vunpack.c.l.b16 %v250
    %v868 = vunpack.c.h.b16 %v250
    %v869 = vunpack.c.l.b16 %v251
    %v870 = vunpack.c.h.b16 %v251
    %v871 = vunpack.c.l.b16 %v252
    %v872 = vunpack.c.h.b16 %v252
    %v873 = vunpack.c.l.b16 %v253
    %v874 = vunpack.c.h.b16 %v253
    %v875 = vunpack.c.l.b16 %v254
    %v876 = vunpack.c.h.b16 %v254
    %v877 = vunpack.c.l.b16 %v255
    %v878 = vunpack.c.h.b16 %v255
    %v879 = vunpack.c.l.b16 %v256
    %v880 = vunpack.c.h.b16 %v256
    %v881 = vunpack.c.l.b16 %v257
    %v882 = vunpack.c.h.b16 %v257
    %v883 = vunpack.c.l.b16 %v258
    %v884 = vunpack.c.h.b16 %v258
    %v885 = vunpack.c.l.b16 %v259
    %v886 = vunpack.c.h.b16 %v259
    %v887 = vunpack.c.l.b16 %v260
    %v888 = vunpack.c.h.b16 %v260
    %v889 = vpack.c.b16 %v509, %v505
    %v890 = vpack.c.b16 %v510, %v506
    %v891 = vpack.c.b16 %v511, %v507
    %v892 = vpack.c.b16 %v512, %v508
    %v893 = vpack.c.b16 %v517, %v513
    %v894 = vpack.c.b16 %v518, %v514
    %v895 = vpack.c.b16 %v519, %v515
    %v896 = vpack.c.b16 %v520, %v516
    %v897 = vpack.c.b16 %v525, %v521
    %v898 = vpack.c.b16 %v526, %v522
    %v899 = vpack.c.b16 %v527, %v523
    %v900 = vpack.c.b16 %v528, %v524
    %v901 = vpack.c.b16 %v533, %v529
    %v902 = vpack.c.b16 %v534, %v530
    %v903 = vpack.c.b16 %v535, %v531
    %v904 = vpack.c.b16 %v536, %v532
    %v905 = vpack.c.b16 %v541, %v537
    %v906 = vpack.c.b16 %v542, %v538
    %v907 = vpack.c.b16 %v543, %v539
    %v908 = vpack.c.b16 %v544, %v540
    %v909 = vpack.c.b16 %v549, %v545
    %v910 = vpack.c.b16 %v550, %v546
    %v911 = vpack.c.b16 %v551, %v547
    %v912 = vpack.c.b16 %v552, %v548
    %v913 = vpack.c.b16 %v557, %v553
    %v914 = vpack.c.b16 %v558, %v554
    %v915 = vpack.c.b16 %v559, %v555
    %v916 = vpack.c.b16 %v560, %v556
    %v917 = vpack.c.b16 %v565, %v561
    %v918 = vpack.c.b16 %v566, %v562
    %v919 = vpack.c.b16 %v567, %v563
    %v920 = vpack.c.b16 %v568, %v564
    %v921 = vpack.c.b16 %v573, %v569
    %v922 = vpack.c.b16 %v574, %v570
    %v923 = vpack.c.b16 %v575, %v571
    %v924 = vpack.c.b16 %v576, %v572
    %v925 = vpack.c.b16 %v581, %v577
    %v926 = vpack.c.b16 %v582, %v578
    %v927 = vpack.c.b16 %v583, %v579
    %v928 = vpack.c.b16 %v584, %v580
    %v929 = vpack.c.b16 %v589, %v585
    %v930 = vpack.c.b16 %v590, %v586
    %v931 = vpack.c.b16 %v591, %v587
    %v932 = vpack.c.b16 %v592, %v588
    %v933 = vpack.c.b16 %v597, %v593
    %v934 = vpack.c.b16 %v598, %v594
    %v935 = vpack.c.b16 %v599, %v595
    %v936 = vpack.c.b16 %v600, %v596
    %v937 = vpack.c.b16 %v605, %v601
    %v938 = vpack.c.b16 %v606, %v602
    %v939 = vpack.c.b16 %v607, %v603
    %v940 = vpack.c.b16 %v608, %v604
    %v941 = vpack.c.b16 %v613, %v609
    %v942 = vpack.c.b16 %v614, %v610
    %v943 = vpack.c.b16 %v615, %v611
    %v944 = vpack.c.b16 %v616, %v612
    %v945 = vpack.c.b16 %v621, %v617
    %v946 = vpack.c.b16 %v622, %v618
    %v947 = vpack.c.b16 %v623, %v619
    %v948 = vpack.c.b16 %v624, %v620
    %v949 = vpack.c.b16 %v629, %v625
    %v950 = vpack.c.b16 %v630, %v626
    %v951 = vpack.c.b16 %v631, %v627
    %v952 = vpack.c.b16 %v632, %v628
    %v953 = vpack.c.b16 %v637, %v633
    %v954 = vpack.c.b16 %v638, %v634
    %v955 = vpack.c.b16 %v639, %v635
    %v956 = vpack.c.b16 %v640, %v636
    %v957 = vpack.c.b16 %v645, %v641
    %v958 = vpack.c.b16 %v646, %v642
    %v959 = vpack.c.b16 %v647, %v643
    %v960 = vpack.c.b16 %v648, %v644
    %v961 = vpack.c.b16 %v653, %v649
    %v962 = vpack.c.b16 %v654, %v650
    %v963 = vpack.c.b16 %v655, %v651
    %v964 = vpack.c.b16 %v656, %v652
    %v965 = vpack.c.b16 %v661, %v657
    %v966 = vpack.c.b16 %v662, %v658
    %v967 = vpack.c.b16 %v663, %v659
    %v968 = vpack.c.b16 %v664, %v660
    %v969 = vpack.c.b16 %v669, %v665
    %v970 = vpack.c.b16 %v670, %v666
    %v971 = vpack.c.b16 %v671, %v667
    %v972 = vpack.c.b16 %v672, %v668
    %v973 = vpack.c.b16 %v677, %v673
    %v974 = vpack.c.b16 %v678, %v674
    %v975 = vpack.c.b16 %v679, %v675
    %v976 = vpack.c.b16 %v680, %v676
    %v977 = vpack.c.b16 %v685, %v681
    %v978 = vpack.c.b16 %v686, %v682
    %v979 = vpack.c.b16 %v687, %v683
    %v980 = vpack.c.b16 %v688, %v684
    %v981 = vpack.c.b16 %v693, %v689
    %v982 = vpack.c.b16 %v694, %v690
    %v983 = vpack.c.b16 %v695, %v691
    %v984 = vpack.c.b16 %v696, %v692
    %v985 = vpack.c.b16 %v701, %v697
    %v986 = vpack.c.b16 %v702, %v698
    %v987 = vpack.c.b16 %v703, %v699
    %v988 = vpack.c.b16 %v704, %v700
    %v989 = vpack.c.b16 %v709, %v705
    %v990 = vpack.c.b16 %v710, %v706
    %v991 = vpack.c.b16 %v711, %v707
    %v992 = vpack.c.b16 %v712, %v708
    %v993 = vpack.c.b16 %v717, %v713
    %v994 = vpack.c.b16 %v718, %v714
    %v995 = vpack.c.b16 %v719, %v715
    %v996 = vpack.c.b16 %v720, %v716
    %v997 = vpack.c.b16 %v725, %v721
    %v998 = vpack.c.b16 %v726, %v722
    %v999 = vpack.c.b16 %v727, %v723
    %v1000 = vpack.c.b16 %v728, %v724
    %v1001 = vpack.c.b16 %v733, %v729
    %v1002 = vpack.c.b16 %v734, %v730
    %v1003 = vpack.c.b16 %v735, %v731
    %v1004 = vpack.c.b16 %v736, %v732
    %v1005 = vpack.c.b16 %v741, %v737
    %v1006 = vpack.c.b16 %v742, %v738
    %v1007 = vpack.c.b16 %v743, %v739
    %v1008 = vpack.c.b16 %v744, %v740
    %v1009 = vpack.c.b16 %v749, %v745
    %v1010 = vpack.c.b16 %v750, %v746
    %v1011 = vpack.c.b16 %v751, %v747
    %v1012 = vpack.c.b16 %v752, %v748
    %v1013 = vpack.c.b16 %v757, %v753
    %v1014 = vpack.c.b16 %v758, %v754
    %v1015 = vpack.c.b16 %v759, %v755
    %v1016 = vpack.c.b16 %v760, %v756
    %v1017 = vpack.c.b16 %v765, %v761
    %v1018 = vpack.c.b16 %v766, %v762
    %v1019 = vpack.c.b16 %v767, %v763
    %v1020 = vpack.c.b16 %v768, %v764
    %v1021 = vpack.c.b16 %v773, %v769
    %v1022 = vpack.c.b16 %v774, %v770
    %v1023 = vpack.c.b16 %v775, %v771
    %v1024 = vpack.c.b16 %v776, %v772
    %v1025 = vpack.c.b16 %v781, %v777
    %v1026 = vpack.c.b16 %v782, %v778
    %v1027 = vpack.c.b16 %v783, %v779
    %v1028 = vpack.c.b16 %v784, %v780
    %v1029 = vpack.c.b16 %v789, %v785
    %v1030 = vpack.c.b16 %v790, %v786
    %v1031 = vpack.c.b16 %v791, %v787
    %v1032 = vpack.c.b16 %v792, %v788
    %v1033 = vpack.c.b16 %v797, %v793
    %v1034 = vpack.c.b16 %v798, %v794
    %v1035 = vpack.c.b16 %v799, %v795
    %v1036 = vpack.c.b16 %v800, %v796
    %v1037 = vpack.c.b16 %v805, %v801
    %v1038 = vpack.c.b16 %v806, %v802
    %v1039 = vpack.c.b16 %v807, %v803
    %v1040 = vpack.c.b16 %v808, %v804
    %v1041 = vpack.c.b16 %v813, %v809
    %v1042 = vpack.c.b16 %v814, %v810
    %v1043 = vpack.c.b16 %v815, %v811
    %v1044 = vpack.c.b16 %v816, %v812
    %v1045 = vpack.c.b16 %v821, %v817
    %v1046 = vpack.c.b16 %v822, %v818
    %v1047 = vpack.c.b16 %v823, %v819
    %v1048 = vpack.c.b16 %v824, %v820
    %v1049 = vpack.c.b16 %v829, %v825
    %v1050 = vpack.c.b16 %v830, %v826
    %v1051 = vpack.c.b16 %v831, %v827
    %v1052 = vpack.c.b16 %v832, %v828
    %v1053 = vpack.c.b16 %v837, %v833
    %v1054 = vpack.c.b16 %v838, %v834
    %v1055 = vpack.c.b16 %v839, %v835
    %v1056 = vpack.c.b16 %v840, %v836
    %v1057 = vpack.c.b16 %v845, %v841
    %v1058 = vpack.c.b16 %v846, %v842
    %v1059 = vpack.c.b16 %v847, %v843
    %v1060 = vpack.c.b16 %v848, %v844
    %v1061 = vpack.c.b16 %v853, %v849
    %v1062 = vpack.c.b16 %v854, %v850
    %v1063 = vpack.c.b16 %v855, %v851
    %v1064 = vpack.c.b16 %v856, %v852
    %v1065 = vpack.c.b16 %v861, %v857
    %v1066 = vpack.c.b16 %v862, %v858
    %v1067 = vpack.c.b16 %v863, %v859
    %v1068 = vpack.c.b16 %v864, %v860
    %v1069 = vpack.c.b16 %v869, %v865
    %v1070 = vpack.c.b16 %v870, %v866
    %v1071 = vpack.c.b16 %v871, %v867
    %v1072 = vpack.c.b16 %v872, %v868
    %v1073 = vpack.c.b16 %v877, %v873
    %v1074 = vpack.c.b16 %v878, %v874
    %v1075 = vpack.c.b16 %v879, %v875
    %v1076 = vpack.c.b16 %v880, %v876
    %v1077 = vpack.c.b16 %v885, %v881
    %v1078 = vpack.c.b16 %v886, %v882
    %v1079 = vpack.c.b16 %v887, %v883
    %v1080 = vpack.c.b16 %v888, %v884
    %1273 = vmatprep.subr.bf16.mxu0 %v890
    %1274 = vmatpush1.bf16.msra.mxu0 %v889
    %1275 = vmatprep.subr.bf16.mxu0 %v894
    %1276 = vmatpush1.bf16.msra.mxu0 %v893
    %1277 = vmatprep.subr.bf16.mxu0 %v898
    %1278 = vmatpush1.bf16.msra.mxu0 %v897
    %1279 = vmatprep.subr.bf16.mxu0 %v902
    %1280 = vmatpush1.bf16.msra.mxu0 %v901
    %1281 = vmatprep.subr.bf16.mxu0 %v906
    %1282 = vmatpush1.bf16.msra.mxu0 %v905
    %1283 = vmatprep.subr.bf16.mxu0 %v910
    %1284 = vmatpush1.bf16.msra.mxu0 %v909
    %1285 = vmatprep.subr.bf16.mxu0 %v914
    %1286 = vmatpush1.bf16.msra.mxu0 %v913
    %1287 = vmatprep.subr.bf16.mxu0 %v918
    %1288 = vmatpush1.bf16.msra.mxu0 %v917
    %1289 = vmatprep.subr.bf16.mxu0 %v922
    %1290 = vmatpush1.bf16.msra.mxu0 %v921
    %1291 = vmatprep.subr.bf16.mxu0 %v926
    %1292 = vmatpush1.bf16.msra.mxu0 %v925
    %1293 = vmatprep.subr.bf16.mxu0 %v930
    %1294 = vmatpush1.bf16.msra.mxu0 %v929
    %1295 = vmatprep.subr.bf16.mxu0 %v934
    %1296 = vmatpush1.bf16.msra.mxu0 %v933
    %1297 = vmatprep.subr.bf16.mxu0 %v938
    %1298 = vmatpush1.bf16.msra.mxu0 %v937
    %1299 = vmatprep.subr.bf16.mxu0 %v942
    %1300 = vmatpush1.bf16.msra.mxu0 %v941
    %1301 = vmatprep.subr.bf16.mxu0 %v946
    %1302 = vmatpush1.bf16.msra.mxu0 %v945
    %1303 = vmatprep.subr.bf16.mxu0 %v950
    %1304 = vmatpush1.bf16.msra.mxu0 %v949
    %1305 = vmatprep.mubr.bf16.mxu0 %v302
    %1306 = vmatmul.mubr.bf16.gmra.mrb[0].mxu0 %v301
    %v1307 = vpop.f32.mrb[0].mxu0
    %v1308 = vadd.f32 %v266, %v1307
    %v1309 = vpop.f32.mrb[0].mxu0
    %v1310 = vadd.f32 %v270, %v1309
    %v1311 = vpop.f32.mrb[0].mxu0
    %v1312 = vadd.f32 %v266, %v1311
    %v1313 = vpop.f32.mrb[0].mxu0
    %v1314 = vadd.f32 %v270, %v1313
    %1315 = vdwg.mxu0
    %1316 = vmatprep.subr.bf16.mxu0 %v954
    %1317 = vmatpush1.bf16.msra.mxu0 %v953
    %1318 = vmatprep.subr.bf16.mxu0 %v958
    %1319 = vmatpush1.bf16.msra.mxu0 %v957
    %1320 = vmatprep.subr.bf16.mxu0 %v962
    %1321 = vmatpush1.bf16.msra.mxu0 %v961
    %1322 = vmatprep.subr.bf16.mxu0 %v966
    %1323 = vmatpush1.bf16.msra.mxu0 %v965
    %1324 = vmatprep.subr.bf16.mxu0 %v970
    %1325 = vmatpush1.bf16.msra.mxu0 %v969
    %1326 = vmatprep.subr.bf16.mxu0 %v974
    %1327 = vmatpush1.bf16.msra.mxu0 %v973
    %1328 = vmatprep.subr.bf16.mxu0 %v978
    %1329 = vmatpush1.bf16.msra.mxu0 %v977
    %1330 = vmatprep.subr.bf16.mxu0 %v982
    %1331 = vmatpush1.bf16.msra.mxu0 %v981
    %1332 = vmatprep.subr.bf16.mxu0 %v986
    %1333 = vmatpush1.bf16.msra.mxu0 %v985
    %1334 = vmatprep.subr.bf16.mxu0 %v990
    %1335 = vmatpush1.bf16.msra.mxu0 %v989
    %1336 = vmatprep.subr.bf16.mxu0 %v994
    %1337 = vmatpush1.bf16.msra.mxu0 %v993
    %1338 = vmatprep.subr.bf16.mxu0 %v998
    %1339 = vmatpush1.bf16.msra.mxu0 %v997
    %1340 = vmatprep.subr.bf16.mxu0 %v1002
    %1341 = vmatpush1.bf16.msra.mxu0 %v1001
    %1342 = vmatprep.subr.bf16.mxu0 %v1006
    %1343 = vmatpush1.bf16.msra.mxu0 %v1005
    %1344 = vmatprep.subr.bf16.mxu0 %v1010
    %1345 = vmatpush1.bf16.msra.mxu0 %v1009
    %1346 = vmatprep.subr.bf16.mxu0 %v1014
    %1347 = vmatpush1.bf16.msra.mxu0 %v1013
    %1348 = vmatprep.mubr.bf16.mxu0 %v304
    %1349 = vmatmul.mubr.bf16.gmra.mrb[0].mxu0 %v303
    %v1350 = vpop.f32.mrb[0].mxu0
    %v1351 = vadd.f32 %v1308, %v1350
    %v1352 = vpop.f32.mrb[0].mxu0
    %v1353 = vadd.f32 %v1310, %v1352
    %v1354 = vpop.f32.mrb[0].mxu0
    %v1355 = vadd.f32 %v1312, %v1354
    %v1356 = vpop.f32.mrb[0].mxu0
    %v1357 = vadd.f32 %v1314, %v1356
    %1358 = vdwg.mxu0
    %1359 = vmatprep.subr.bf16.mxu0 %v1018
    %1360 = vmatpush1.bf16.msra.mxu0 %v1017
    %1361 = vmatprep.subr.bf16.mxu0 %v1022
    %1362 = vmatpush1.bf16.msra.mxu0 %v1021
    %1363 = vmatprep.subr.bf16.mxu0 %v1026
    %1364 = vmatpush1.bf16.msra.mxu0 %v1025
    %1365 = vmatprep.subr.bf16.mxu0 %v1030
    %1366 = vmatpush1.bf16.msra.mxu0 %v1029
    %1367 = vmatprep.subr.bf16.mxu0 %v1034
    %1368 = vmatpush1.bf16.msra.mxu0 %v1033
    %1369 = vmatprep.subr.bf16.mxu0 %v1038
    %1370 = vmatpush1.bf16.msra.mxu0 %v1037
    %1371 = vmatprep.subr.bf16.mxu0 %v1042
    %1372 = vmatpush1.bf16.msra.mxu0 %v1041
    %1373 = vmatprep.subr.bf16.mxu0 %v1046
    %1374 = vmatpush1.bf16.msra.mxu0 %v1045
    %1375 = vmatprep.subr.bf16.mxu0 %v1050
    %1376 = vmatpush1.bf16.msra.mxu0 %v1049
    %1377 = vmatprep.subr.bf16.mxu0 %v1054
    %1378 = vmatpush1.bf16.msra.mxu0 %v1053
    %1379 = vmatprep.subr.bf16.mxu0 %v1058
    %1380 = vmatpush1.bf16.msra.mxu0 %v1057
    %1381 = vmatprep.subr.bf16.mxu0 %v1062
    %1382 = vmatpush1.bf16.msra.mxu0 %v1061
    %1383 = vmatprep.subr.bf16.mxu0 %v1066
    %1384 = vmatpush1.bf16.msra.mxu0 %v1065
    %1385 = vmatprep.subr.bf16.mxu0 %v1070
    %1386 = vmatpush1.bf16.msra.mxu0 %v1069
    %1387 = vmatprep.subr.bf16.mxu0 %v1074
    %1388 = vmatpush1.bf16.msra.mxu0 %v1073
    %1389 = vmatprep.subr.bf16.mxu0 %v1078
    %1390 = vmatpush1.bf16.msra.mxu0 %v1077
    %1391 = vmatprep.mubr.bf16.mxu0 %v306
    %1392 = vmatmul.mubr.bf16.gmra.mrb[0].mxu0 %v305
    %v1393 = vpop.f32.mrb[0].mxu0
    %v1394 = vadd.f32 %v1351, %v1393
    %v1395 = vpop.f32.mrb[0].mxu0
    %v1396 = vadd.f32 %v1353, %v1395
    %v1397 = vpop.f32.mrb[0].mxu0
    %v1398 = vadd.f32 %v1355, %v1397
    %v1399 = vpop.f32.mrb[0].mxu0
    %v1400 = vadd.f32 %v1357, %v1399
    %1401 = vdwg.mxu0
    %1402 = vmatprep.subr.bf16.mxu0 %v892
    %1403 = vmatpush1.bf16.msra.mxu0 %v891
    %1404 = vmatprep.subr.bf16.mxu0 %v896
    %1405 = vmatpush1.bf16.msra.mxu0 %v895
    %1406 = vmatprep.subr.bf16.mxu0 %v900
    %1407 = vmatpush1.bf16.msra.mxu0 %v899
    %1408 = vmatprep.subr.bf16.mxu0 %v904
    %1409 = vmatpush1.bf16.msra.mxu0 %v903
    %1410 = vmatprep.subr.bf16.mxu0 %v908
    %1411 = vmatpush1.bf16.msra.mxu0 %v907
    %1412 = vmatprep.subr.bf16.mxu0 %v912
    %1413 = vmatpush1.bf16.msra.mxu0 %v911
    %1414 = vmatprep.subr.bf16.mxu0 %v916
    %1415 = vmatpush1.bf16.msra.mxu0 %v915
    %1416 = vmatprep.subr.bf16.mxu0 %v920
    %1417 = vmatpush1.bf16.msra.mxu0 %v919
    %1418 = vmatprep.subr.bf16.mxu0 %v924
    %1419 = vmatpush1.bf16.msra.mxu0 %v923
    %1420 = vmatprep.subr.bf16.mxu0 %v928
    %1421 = vmatpush1.bf16.msra.mxu0 %v927
    %1422 = vmatprep.subr.bf16.mxu0 %v932
    %1423 = vmatpush1.bf16.msra.mxu0 %v931
    %1424 = vmatprep.subr.bf16.mxu0 %v936
    %1425 = vmatpush1.bf16.msra.mxu0 %v935
    %1426 = vmatprep.subr.bf16.mxu0 %v940
    %1427 = vmatpush1.bf16.msra.mxu0 %v939
    %1428 = vmatprep.subr.bf16.mxu0 %v944
    %1429 = vmatpush1.bf16.msra.mxu0 %v943
    %1430 = vmatprep.subr.bf16.mxu0 %v948
    %1431 = vmatpush1.bf16.msra.mxu0 %v947
    %1432 = vmatprep.subr.bf16.mxu0 %v952
    %1433 = vmatpush1.bf16.msra.mxu0 %v951
    %1434 = vmatprep.mubr.bf16.mxu0 %v302
    %1435 = vmatmul.mubr.bf16.gmra.mrb[0].mxu0 %v301
    %v1436 = vpop.f32.mrb[0].mxu0
    %v1437 = vadd.f32 %v274, %v1436
    %v1438 = vpop.f32.mrb[0].mxu0
    %v1439 = vadd.f32 %v278, %v1438
    %v1440 = vpop.f32.mrb[0].mxu0
    %v1441 = vadd.f32 %v274, %v1440
    %v1442 = vpop.f32.mrb[0].mxu0
    %v1443 = vadd.f32 %v278, %v1442
    %1444 = vdwg.mxu0
    %1445 = vmatprep.subr.bf16.mxu0 %v956
    %1446 = vmatpush1.bf16.msra.mxu0 %v955
    %1447 = vmatprep.subr.bf16.mxu0 %v960
    %1448 = vmatpush1.bf16.msra.mxu0 %v959
    %1449 = vmatprep.subr.bf16.mxu0 %v964
    %1450 = vmatpush1.bf16.msra.mxu0 %v963
    %1451 = vmatprep.subr.bf16.mxu0 %v968
    %1452 = vmatpush1.bf16.msra.mxu0 %v967
    %1453 = vmatprep.subr.bf16.mxu0 %v972
    %1454 = vmatpush1.bf16.msra.mxu0 %v971
    %1455 = vmatprep.subr.bf16.mxu0 %v976
    %1456 = vmatpush1.bf16.msra.mxu0 %v975
    %1457 = vmatprep.subr.bf16.mxu0 %v980
    %1458 = vmatpush1.bf16.msra.mxu0 %v979
    %1459 = vmatprep.subr.bf16.mxu0 %v984
    %1460 = vmatpush1.bf16.msra.mxu0 %v983
    %1461 = vmatprep.subr.bf16.mxu0 %v988
    %1462 = vmatpush1.bf16.msra.mxu0 %v987
    %1463 = vmatprep.subr.bf16.mxu0 %v992
    %1464 = vmatpush1.bf16.msra.mxu0 %v991
    %1465 = vmatprep.subr.bf16.mxu0 %v996
    %1466 = vmatpush1.bf16.msra.mxu0 %v995
    %1467 = vmatprep.subr.bf16.mxu0 %v1000
    %1468 = vmatpush1.bf16.msra.mxu0 %v999
    %1469 = vmatprep.subr.bf16.mxu0 %v1004
    %1470 = vmatpush1.bf16.msra.mxu0 %v1003
    %1471 = vmatprep.subr.bf16.mxu0 %v1008
    %1472 = vmatpush1.bf16.msra.mxu0 %v1007
    %1473 = vmatprep.subr.bf16.mxu0 %v1012
    %1474 = vmatpush1.bf16.msra.mxu0 %v1011
    %1475 = vmatprep.subr.bf16.mxu0 %v1016
    %1476 = vmatpush1.bf16.msra.mxu0 %v1015
    %1477 = vmatprep.mubr.bf16.mxu0 %v304
    %1478 = vmatmul.mubr.bf16.gmra.mrb[0].mxu0 %v303
    %v1479 = vpop.f32.mrb[0].mxu0
    %v1480 = vadd.f32 %v1437, %v1479
    %v1481 = vpop.f32.mrb[0].mxu0
    %v1482 = vadd.f32 %v1439, %v1481
    %v1483 = vpop.f32.mrb[0].mxu0
    %v1484 = vadd.f32 %v1441, %v1483
    %v1485 = vpop.f32.mrb[0].mxu0
    %v1486 = vadd.f32 %v1443, %v1485
    %1487 = vdwg.mxu0
    %1488 = vmatprep.subr.bf16.mxu0 %v1020
    %1489 = vmatpush1.bf16.msra.mxu0 %v1019
    %1490 = vmatprep.subr.bf16.mxu0 %v1024
    %1491 = vmatpush1.bf16.msra.mxu0 %v1023
    %1492 = vmatprep.subr.bf16.mxu0 %v1028
    %1493 = vmatpush1.bf16.msra.mxu0 %v1027
    %1494 = vmatprep.subr.bf16.mxu0 %v1032
    %1495 = vmatpush1.bf16.msra.mxu0 %v1031
    %1496 = vmatprep.subr.bf16.mxu0 %v1036
    %1497 = vmatpush1.bf16.msra.mxu0 %v1035
    %1498 = vmatprep.subr.bf16.mxu0 %v1040
    %1499 = vmatpush1.bf16.msra.mxu0 %v1039
    %1500 = vmatprep.subr.bf16.mxu0 %v1044
    %1501 = vmatpush1.bf16.msra.mxu0 %v1043
    %1502 = vmatprep.subr.bf16.mxu0 %v1048
    %1503 = vmatpush1.bf16.msra.mxu0 %v1047
    %1504 = vmatprep.subr.bf16.mxu0 %v1052
    %1505 = vmatpush1.bf16.msra.mxu0 %v1051
    %1506 = vmatprep.subr.bf16.mxu0 %v1056
    %1507 = vmatpush1.bf16.msra.mxu0 %v1055
    %1508 = vmatprep.subr.bf16.mxu0 %v1060
    %1509 = vmatpush1.bf16.msra.mxu0 %v1059
    %1510 = vmatprep.subr.bf16.mxu0 %v1064
    %1511 = vmatpush1.bf16.msra.mxu0 %v1063
    %1512 = vmatprep.subr.bf16.mxu0 %v1068
    %1513 = vmatpush1.bf16.msra.mxu0 %v1067
    %1514 = vmatprep.subr.bf16.mxu0 %v1072
    %1515 = vmatpush1.bf16.msra.mxu0 %v1071
    %1516 = vmatprep.subr.bf16.mxu0 %v1076
    %1517 = vmatpush1.bf16.msra.mxu0 %v1075
    %1518 = vmatprep.subr.bf16.mxu0 %v1080
    %1519 = vmatpush1.bf16.msra.mxu0 %v1079
    %1520 = vmatprep.mubr.bf16.mxu0 %v306
    %1521 = vmatmul.mubr.bf16.gmra.mrb[0].mxu0 %v305
    %v1522 = vpop.f32.mrb[0].mxu0
    %v1523 = vadd.f32 %v1480, %v1522
    %v1524 = vpop.f32.mrb[0].mxu0
    %v1525 = vadd.f32 %v1482, %v1524
    %v1526 = vpop.f32.mrb[0].mxu0
    %v1527 = vadd.f32 %v1484, %v1526
    %v1528 = vpop.f32.mrb[0].mxu0
    %v1529 = vadd.f32 %v1486, %v1528
    %1530 = vdwg.mxu0
    %v1531 = vmax.f32 %v1394, 0.0
    %v1532 = vmax.f32 %v1396, 0.0
    %v1533 = vmax.f32 %v1523, 0.0
    %v1534 = vmax.f32 %v1525, 0.0
    %v1535 = vmax.f32 %v1398, 0.0
    %v1536 = vmax.f32 %v1400, 0.0
    %v1537 = vmax.f32 %v1527, 0.0
    %v1538 = vmax.f32 %v1529, 0.0
    %v1539 = vpack.c.bf16 %v1535, %v1531
    %v1540 = vpack.c.bf16 %v1536, %v1532
    %v1541 = vpack.c.bf16 %v1537, %v1533
    %v1542 = vpack.c.bf16 %v1538, %v1534
    %v1543 = vld [vmem:[#allocation7] sm:$0xf]
    %v1544 = vld [vmem:[#allocation7 + $0x4] sm:$0xf]
    %v1545 = vld [vmem:[#allocation7 + $0x8] sm:$0xf]
    %v1546 = vld [vmem:[#allocation7 + $0xc] sm:$0xf]
    %v1547 = vld [vmem:[#allocation7 + $0x10] sm:$0xf]
    %v1548 = vld [vmem:[#allocation7 + $0x14] sm:$0xf]
    %v1549 = vld [vmem:[#allocation7 + $0x18] sm:$0xf]
    %v1550 = vld [vmem:[#allocation7 + $0x1c] sm:$0xf]
    %v1551 = vld [vmem:[#allocation7 + $0x20] sm:$0xf]
    %v1552 = vld [vmem:[#allocation7 + $0x24] sm:$0xf]
    %v1553 = vld [vmem:[#allocation7 + $0x28] sm:$0xf]
    %v1554 = vld [vmem:[#allocation7 + $0x2c] sm:$0xf]
    %v1555 = vld [vmem:[#allocation7 + $0x30] sm:$0xf]
    %v1556 = vld [vmem:[#allocation7 + $0x34] sm:$0xf]
    %v1557 = vld [vmem:[#allocation7 + $0x38] sm:$0xf]
    %v1558 = vld [vmem:[#allocation7 + $0x3c] sm:$0xf]
    %v1559 = vld [vmem:[#allocation7 + $0x40] sm:$0xf]
    %v1560 = vld [vmem:[#allocation7 + $0x44] sm:$0xf]
    %v1561 = vld [vmem:[#allocation7 + $0x48] sm:$0xf]
    %v1562 = vld [vmem:[#allocation7 + $0x4c] sm:$0xf]
    %v1563 = vld [vmem:[#allocation7 + $0x50] sm:$0xf]
    %v1564 = vld [vmem:[#allocation7 + $0x54] sm:$0xf]
    %v1565 = vld [vmem:[#allocation7 + $0x58] sm:$0xf]
    %v1566 = vld [vmem:[#allocation7 + $0x5c] sm:$0xf]
    %v1567 = vld [vmem:[#allocation7 + $0x60] sm:$0xf]
    %v1568 = vld [vmem:[#allocation7 + $0x64] sm:$0xf]
    %v1569 = vld [vmem:[#allocation7 + $0x68] sm:$0xf]
    %v1570 = vld [vmem:[#allocation7 + $0x6c] sm:$0xf]
    %v1571 = vld [vmem:[#allocation7 + $0x70] sm:$0xf]
    %v1572 = vld [vmem:[#allocation7 + $0x74] sm:$0xf]
    %v1573 = vld [vmem:[#allocation7 + $0x78] sm:$0xf]
    %v1574 = vld [vmem:[#allocation7 + $0x7c] sm:$0xf]
    %v1575 = vld [vmem:[#allocation7 + $0x80] sm:$0xf]
    %v1576 = vld [vmem:[#allocation7 + $0x84] sm:$0xf]
    %v1577 = vld [vmem:[#allocation7 + $0x88] sm:$0xf]
    %v1578 = vld [vmem:[#allocation7 + $0x8c] sm:$0xf]
    %v1579 = vld [vmem:[#allocation7 + $0x90] sm:$0xf]
    %v1580 = vld [vmem:[#allocation7 + $0x94] sm:$0xf]
    %v1581 = vld [vmem:[#allocation7 + $0x98] sm:$0xf]
    %v1582 = vld [vmem:[#allocation7 + $0x9c] sm:$0xf]
    %v1583 = vld [vmem:[#allocation7 + $0xa0] sm:$0xf]
    %v1584 = vld [vmem:[#allocation7 + $0xa4] sm:$0xf]
    %v1585 = vld [vmem:[#allocation7 + $0xa8] sm:$0xf]
    %v1586 = vld [vmem:[#allocation7 + $0xac] sm:$0xf]
    %v1587 = vld [vmem:[#allocation7 + $0xb0] sm:$0xf]
    %v1588 = vld [vmem:[#allocation7 + $0xb4] sm:$0xf]
    %v1589 = vld [vmem:[#allocation7 + $0xb8] sm:$0xf]
    %v1590 = vld [vmem:[#allocation7 + $0xbc] sm:$0xf]
    %v1591 = vld [vmem:[#allocation7 + $0xc0] sm:$0xf]
    %v1592 = vld [vmem:[#allocation7 + $0xc4] sm:$0xf]
    %v1593 = vld [vmem:[#allocation7 + $0xc8] sm:$0xf]
    %v1594 = vld [vmem:[#allocation7 + $0xcc] sm:$0xf]
    %v1595 = vld [vmem:[#allocation7 + $0xd0] sm:$0xf]
    %v1596 = vld [vmem:[#allocation7 + $0xd4] sm:$0xf]
    %v1597 = vld [vmem:[#allocation7 + $0xd8] sm:$0xf]
    %v1598 = vld [vmem:[#allocation7 + $0xdc] sm:$0xf]
    %v1599 = vld [vmem:[#allocation7 + $0xe0] sm:$0xf]
    %v1600 = vld [vmem:[#allocation7 + $0xe4] sm:$0xf]
    %v1601 = vld [vmem:[#allocation7 + $0xe8] sm:$0xf]
    %v1602 = vld [vmem:[#allocation7 + $0xec] sm:$0xf]
    %v1603 = vld [vmem:[#allocation7 + $0xf0] sm:$0xf]
    %v1604 = vld [vmem:[#allocation7 + $0xf4] sm:$0xf]
    %v1605 = vld [vmem:[#allocation7 + $0xf8] sm:$0xf]
    %v1606 = vld [vmem:[#allocation7 + $0xfc] sm:$0xf]
    %v1607 = vld [vmem:[%s4] sm:$0x1]
    %v1609 = vlaneseq
    %v1610 = vshrl.u32 %v1609, 7
    %v1611 = vsub.s32 0, %v1610
    %v1612 = vrot.slane %v1607, %v1611
    %v1678 = vunpack.c.l.b16 %v1543
    %v1679 = vunpack.c.l.b16 %v1544
    %v1680 = vunpack.c.l.b16 %v1545
    %v1681 = vunpack.c.l.b16 %v1546
    %v1682 = vunpack.c.l.b16 %v1547
    %v1683 = vunpack.c.l.b16 %v1548
    %v1684 = vunpack.c.l.b16 %v1549
    %v1685 = vunpack.c.l.b16 %v1550
    %v1686 = vunpack.c.l.b16 %v1551
    %v1687 = vunpack.c.l.b16 %v1552
    %v1688 = vunpack.c.l.b16 %v1553
    %v1689 = vunpack.c.l.b16 %v1554
    %v1690 = vunpack.c.l.b16 %v1555
    %v1691 = vunpack.c.l.b16 %v1556
    %v1692 = vunpack.c.l.b16 %v1557
    %v1693 = vunpack.c.l.b16 %v1558
    %v1694 = vunpack.c.l.b16 %v1559
    %v1695 = vunpack.c.l.b16 %v1560
    %v1696 = vunpack.c.l.b16 %v1561
    %v1697 = vunpack.c.l.b16 %v1562
    %v1698 = vunpack.c.l.b16 %v1563
    %v1699 = vunpack.c.l.b16 %v1564
    %v1700 = vunpack.c.l.b16 %v1565
    %v1701 = vunpack.c.l.b16 %v1566
    %v1702 = vunpack.c.l.b16 %v1567
    %v1703 = vunpack.c.l.b16 %v1568
    %v1704 = vunpack.c.l.b16 %v1569
    %v1705 = vunpack.c.l.b16 %v1570
    %v1706 = vunpack.c.l.b16 %v1571
    %v1707 = vunpack.c.l.b16 %v1572
    %v1708 = vunpack.c.l.b16 %v1573
    %v1709 = vunpack.c.l.b16 %v1574
    %v1710 = vunpack.c.l.b16 %v1575
    %v1711 = vunpack.c.l.b16 %v1576
    %v1712 = vunpack.c.l.b16 %v1577
    %v1713 = vunpack.c.l.b16 %v1578
    %v1714 = vunpack.c.l.b16 %v1579
    %v1715 = vunpack.c.l.b16 %v1580
    %v1716 = vunpack.c.l.b16 %v1581
    %v1717 = vunpack.c.l.b16 %v1582
    %v1718 = vunpack.c.l.b16 %v1583
    %v1719 = vunpack.c.l.b16 %v1584
    %v1720 = vunpack.c.l.b16 %v1585
    %v1721 = vunpack.c.l.b16 %v1586
    %v1722 = vunpack.c.l.b16 %v1587
    %v1723 = vunpack.c.l.b16 %v1588
    %v1724 = vunpack.c.l.b16 %v1589
    %v1725 = vunpack.c.l.b16 %v1590
    %v1726 = vunpack.c.l.b16 %v1591
    %v1727 = vunpack.c.l.b16 %v1592
    %v1728 = vunpack.c.l.b16 %v1593
    %v1729 = vunpack.c.l.b16 %v1594
    %v1730 = vunpack.c.l.b16 %v1595
    %v1731 = vunpack.c.l.b16 %v1596
    %v1732 = vunpack.c.l.b16 %v1597
    %v1733 = vunpack.c.l.b16 %v1598
    %v1734 = vunpack.c.l.b16 %v1599
    %v1735 = vunpack.c.l.b16 %v1600
    %v1736 = vunpack.c.l.b16 %v1601
    %v1737 = vunpack.c.l.b16 %v1602
    %v1738 = vunpack.c.l.b16 %v1603
    %v1739 = vunpack.c.l.b16 %v1604
    %v1740 = vunpack.c.l.b16 %v1605
    %v1741 = vunpack.c.l.b16 %v1606
    %v1742 = vpack.c.b16 %v1679, %v1678
    %v1743 = vpack.c.b16 %v1681, %v1680
    %v1744 = vpack.c.b16 %v1683, %v1682
    %v1745 = vpack.c.b16 %v1685, %v1684
    %v1746 = vpack.c.b16 %v1687, %v1686
    %v1747 = vpack.c.b16 %v1689, %v1688
    %v1748 = vpack.c.b16 %v1691, %v1690
    %v1749 = vpack.c.b16 %v1693, %v1692
    %v1750 = vpack.c.b16 %v1695, %v1694
    %v1751 = vpack.c.b16 %v1697, %v1696
    %v1752 = vpack.c.b16 %v1699, %v1698
    %v1753 = vpack.c.b16 %v1701, %v1700
    %v1754 = vpack.c.b16 %v1703, %v1702
    %v1755 = vpack.c.b16 %v1705, %v1704
    %v1756 = vpack.c.b16 %v1707, %v1706
    %v1757 = vpack.c.b16 %v1709, %v1708
    %v1758 = vpack.c.b16 %v1711, %v1710
    %v1759 = vpack.c.b16 %v1713, %v1712
    %v1760 = vpack.c.b16 %v1715, %v1714
    %v1761 = vpack.c.b16 %v1717, %v1716
    %v1762 = vpack.c.b16 %v1719, %v1718
    %v1763 = vpack.c.b16 %v1721, %v1720
    %v1764 = vpack.c.b16 %v1723, %v1722
    %v1765 = vpack.c.b16 %v1725, %v1724
    %v1766 = vpack.c.b16 %v1727, %v1726
    %v1767 = vpack.c.b16 %v1729, %v1728
    %v1768 = vpack.c.b16 %v1731, %v1730
    %v1769 = vpack.c.b16 %v1733, %v1732
    %v1770 = vpack.c.b16 %v1735, %v1734
    %v1771 = vpack.c.b16 %v1737, %v1736
    %v1772 = vpack.c.b16 %v1739, %v1738
    %v1773 = vpack.c.b16 %v1741, %v1740
    %1806 = vmatprep.subr.bf16.mxu0 0
    %1807 = vmatpush1.bf16.msra.mxu0 %v1742
    %1808 = vmatprep.subr.bf16.mxu0 0
    %1809 = vmatpush1.bf16.msra.mxu0 %v1743
    %1810 = vmatprep.subr.bf16.mxu0 0
    %1811 = vmatpush1.bf16.msra.mxu0 %v1744
    %1812 = vmatprep.subr.bf16.mxu0 0
    %1813 = vmatpush1.bf16.msra.mxu0 %v1745
    %1814 = vmatprep.subr.bf16.mxu0 0
    %1815 = vmatpush1.bf16.msra.mxu0 %v1746
    %1816 = vmatprep.subr.bf16.mxu0 0
    %1817 = vmatpush1.bf16.msra.mxu0 %v1747
    %1818 = vmatprep.subr.bf16.mxu0 0
    %1819 = vmatpush1.bf16.msra.mxu0 %v1748
    %1820 = vmatprep.subr.bf16.mxu0 0
    %1821 = vmatpush1.bf16.msra.mxu0 %v1749
    %1822 = vmatprep.subr.bf16.mxu0 0
    %1823 = vmatpush1.bf16.msra.mxu0 %v1750
    %1824 = vmatprep.subr.bf16.mxu0 0
    %1825 = vmatpush1.bf16.msra.mxu0 %v1751
    %1826 = vmatprep.subr.bf16.mxu0 0
    %1827 = vmatpush1.bf16.msra.mxu0 %v1752
    %1828 = vmatprep.subr.bf16.mxu0 0
    %1829 = vmatpush1.bf16.msra.mxu0 %v1753
    %1830 = vmatprep.subr.bf16.mxu0 0
    %1831 = vmatpush1.bf16.msra.mxu0 %v1754
    %1832 = vmatprep.subr.bf16.mxu0 0
    %1833 = vmatpush1.bf16.msra.mxu0 %v1755
    %1834 = vmatprep.subr.bf16.mxu0 0
    %1835 = vmatpush1.bf16.msra.mxu0 %v1756
    %1836 = vmatprep.subr.bf16.mxu0 0
    %1837 = vmatpush1.bf16.msra.mxu0 %v1757
    %1838 = vmatprep.mubr.bf16.mxu0 %v1540
    %1839 = vmatmul.mubr.bf16.gmra.mrb[0].mxu0 %v1539
    %v1840 = vpop.f32.mrb[0].mxu0
    %v1841 = vadd.f32 %v1612, %v1840
    %v1842 = vpop.f32.mrb[0].mxu0
    %v1843 = vpop.f32.mrb[0].mxu0
    %v1844 = vadd.f32 %v1612, %v1843
    %v1845 = vpop.f32.mrb[0].mxu0
    %1846 = vdwg.mxu0
    %1847 = vmatprep.subr.bf16.mxu0 0
    %1848 = vmatpush1.bf16.msra.mxu0 %v1758
    %1849 = vmatprep.subr.bf16.mxu0 0
    %1850 = vmatpush1.bf16.msra.mxu0 %v1759
    %1851 = vmatprep.subr.bf16.mxu0 0
    %1852 = vmatpush1.bf16.msra.mxu0 %v1760
    %1853 = vmatprep.subr.bf16.mxu0 0
    %1854 = vmatpush1.bf16.msra.mxu0 %v1761
    %1855 = vmatprep.subr.bf16.mxu0 0
    %1856 = vmatpush1.bf16.msra.mxu0 %v1762
    %1857 = vmatprep.subr.bf16.mxu0 0
    %1858 = vmatpush1.bf16.msra.mxu0 %v1763
    %1859 = vmatprep.subr.bf16.mxu0 0
    %1860 = vmatpush1.bf16.msra.mxu0 %v1764
    %1861 = vmatprep.subr.bf16.mxu0 0
    %1862 = vmatpush1.bf16.msra.mxu0 %v1765
    %1863 = vmatprep.subr.bf16.mxu0 0
    %1864 = vmatpush1.bf16.msra.mxu0 %v1766
    %1865 = vmatprep.subr.bf16.mxu0 0
    %1866 = vmatpush1.bf16.msra.mxu0 %v1767
    %1867 = vmatprep.subr.bf16.mxu0 0
    %1868 = vmatpush1.bf16.msra.mxu0 %v1768
    %1869 = vmatprep.subr.bf16.mxu0 0
    %1870 = vmatpush1.bf16.msra.mxu0 %v1769
    %1871 = vmatprep.subr.bf16.mxu0 0
    %1872 = vmatpush1.bf16.msra.mxu0 %v1770
    %1873 = vmatprep.subr.bf16.mxu0 0
    %1874 = vmatpush1.bf16.msra.mxu0 %v1771
    %1875 = vmatprep.subr.bf16.mxu0 0
    %1876 = vmatpush1.bf16.msra.mxu0 %v1772
    %1877 = vmatprep.subr.bf16.mxu0 0
    %1878 = vmatpush1.bf16.msra.mxu0 %v1773
    %1879 = vmatprep.mubr.bf16.mxu0 %v1542
    %1880 = vmatmul.mubr.bf16.gmra.mrb[0].mxu0 %v1541
    %v1881 = vpop.f32.mrb[0].mxu0
    %v1882 = vadd.f32 %v1841, %v1881
    %v1883 = vpop.f32.mrb[0].mxu0
    %v1884 = vpop.f32.mrb[0].mxu0
    %v1885 = vadd.f32 %v1844, %v1884
    %v1886 = vpop.f32.mrb[0].mxu0
    %1887 = vdwg.mxu0
    %1888 = vst [vmem:[#allocation8] sm:$0xff] %v1882
    %1889 = vst [vmem:[#allocation8 + $0x8] sm:$0xff] %v1885
    // Predicated region
    $region34: #{tpu_custom_call.1} parent=1 // pred_check
      _
    $region35: #{tpu_custom_call.1} parent=1 // pred_check_branch
      %1891 = sbr.rel (0) target = $region37
    $region36: #{tpu_custom_call.1} parent=1 // pred_region
      %s1893 = ssub.s32 256, 256
      %1894 = vsyncadd [#allocation4], %s1893
      %s1895 = sshll.u32 [#allocation8], 4
      %s1896 = int_to_ptr.vmem [resolvable:$true] %s1895
      %1901 = dma.vmem_to_hbm [thread:$0]  %s1896, 256, %s5, [#allocation4], 128, 128, 8
    $region37: #{tpu_custom_call.1} parent=1 // pred_fallthru
      _
    // Predicated region
    $region38: #{tpu_custom_call.1} parent=1 // pred_check
      _
    $region39: #{tpu_custom_call.1} parent=1 // pred_check_branch
      %1903 = sbr.rel (0) target = $region41
    $region40: #{tpu_custom_call.1} parent=1 // pred_region
      %1904 = dma.done [#allocation4], 256
    $region41: #{tpu_custom_call.1} parent=1 // pred_fallthru
      _
    %1905 = vsyncpa [#allocation3], 1
    %1906 = vsyncpa [#allocation6], 1
    %1907 = vsyncpa [#allocation4], 1

</llo_original>
